<compile_context>
chip_gen: v7x
topology: tpu7x:2x2x1
jax: 0.10.0
libtpu: 0.0.40
codegen_flags: <defaults>
</compile_context>

<pallas_src>
import functools

import jax
import jax.numpy as jnp
import numpy as np
from jax.experimental import pallas as pl
from jax.experimental.pallas import tpu as pltpu


# ----------------------------------------------------------------------------
# Fused decoder kernel.  One grid step == one batch element.
# Activation layout inside the kernel: (H, W*C) with channels fastest in the
# minor (lane) dim; W*C == ini_imsize*ini_dim is invariant across layers.
# ----------------------------------------------------------------------------
def _decoder_kernel(xb_ref, wl_ref, bl_ref, *args, us_num):
    n_layer_refs = 3 * us_num + 2
    layer_refs = args[:n_layer_refs]
    o_ref = args[n_layer_refs]
    scratch = args[n_layer_refs + 1:]
    tstacks = scratch[:us_num]              # per up-layer (K*Hin, W*C)
    cstack = scratch[us_num]                # (Kout*Hout, Cout*Wout)

    minor = bl_ref.shape[1]                 # W*C, invariant across layers

    # ---- Linear + folded BN1d + ReLU: one matmul, output already (H0, W*C) --
    act = jnp.maximum(
        jnp.dot(xb_ref[...], wl_ref[...], preferred_element_type=jnp.float32)
        + bl_ref[...], 0.0)                 # (H0, W*C)

    # ---- us_num x (ConvTranspose2d k=4 s=2 p=1 + folded BN2d + ReLU) --------
    for i in range(us_num):
        t_ref = layer_refs[3 * i]           # (W*C, K*W*C)   wide Toeplitz
        u_ref = layer_refs[3 * i + 1]       # (Hout, K*Hin)  0/1 row scatter
        b_ref = layer_refs[3 * i + 2]       # (1, W*C)       folded BN shift
        ts = tstacks[i]
        hin = act.shape[0]
        k_up = t_ref.shape[1] // minor
        # One wide matmul instead of k_up small ones.
        wide = jnp.dot(act, t_ref[...], preferred_element_type=jnp.float32)
        for ky in range(k_up):              # 128-aligned lane slices -> free
            ts[ky * hin:(ky + 1) * hin, :] = wide[:, ky * minor:(ky + 1) * minor]
        pre = jnp.dot(u_ref[...], ts[...], preferred_element_type=jnp.float32)
        act = jnp.maximum(pre + b_ref[...], 0.0)     # (2*hin, W*C)

    # ---- Conv2d k=7 s=1 p=3 (no bias) + Tanh, 3 channels merged into N ------
    tc_ref = layer_refs[3 * us_num]         # (Kout, W*C, Cout*Wout)
    v_ref = layer_refs[3 * us_num + 1]      # (Hout, Kout*Hout)
    k_out = tc_ref.shape[0]
    c_out = o_ref.shape[0]
    h_out = o_ref.shape[1]
    for ky in range(k_out):
        cstack[ky * h_out:(ky + 1) * h_out, :] = jnp.dot(
            act, tc_ref[ky, :, :], preferred_element_type=jnp.float32)
    res = jnp.tanh(jnp.dot(v_ref[...], cstack[...],
                           preferred_element_type=jnp.float32))  # (Hout, Cout*Wout)
    for co in range(c_out):                 # NCHW planes written directly
        o_ref[co, :, :] = res[:, co * h_out:(co + 1) * h_out]


def make_decoder_call(*, batch, feature_size, ini_dim, ini_imsize, us_num):
    h_final = ini_imsize * (2 ** us_num)
    minor = ini_imsize * ini_dim            # W*C, invariant across layers
    h0 = ini_imsize
    k_up, k_out, c_out = 4, 7, 3

    in_specs = [
        pl.BlockSpec((None, h0, h0 * feature_size), lambda b: (b, 0, 0)),
        pl.BlockSpec((h0 * feature_size, minor), lambda b: (0, 0)),
        pl.BlockSpec((h0, minor), lambda b: (0, 0)),
    ]
    scratch = []
    hin = h0
    for _ in range(us_num):
        in_specs += [
            pl.BlockSpec((minor, k_up * minor), lambda b: (0, 0)),
            pl.BlockSpec((2 * hin, k_up * hin), lambda b: (0, 0)),
            pl.BlockSpec((1, minor), lambda b: (0, 0)),
        ]
        scratch.append(pltpu.VMEM((k_up * hin, minor), jnp.float32))
        hin *= 2
    in_specs += [
        pl.BlockSpec((k_out, minor, c_out * h_final), lambda b: (0, 0, 0)),
        pl.BlockSpec((h_final, k_out * h_final), lambda b: (0, 0)),
    ]
    scratch.append(pltpu.VMEM((k_out * h_final, c_out * h_final), jnp.float32))

    kernel = functools.partial(_decoder_kernel, us_num=us_num)
    return pl.pallas_call(
        kernel,
        out_shape=jax.ShapeDtypeStruct((batch, c_out, h_final, h_final),
                                       jnp.float32),
        grid_spec=pltpu.PrefetchScalarGridSpec(
            num_scalar_prefetch=0,
            grid=(batch,),
            in_specs=in_specs,
            out_specs=pl.BlockSpec((None, c_out, h_final, h_final),
                                   lambda b: (b, 0, 0, 0)),
            scratch_shapes=scratch),
        compiler_params=pltpu.CompilerParams(
            dimension_semantics=("parallel",)),
    )


def decoder_forward(x, ops, *, feature_size, ini_dim, ini_imsize, us_num):
    B = x.shape[0]
    h0 = ini_imsize
    # Block-diagonal staging of x (tiny: B*h0*h0*F floats) so the Linear layer
    # is a single dense matmul producing the (H, W*C) slab directly in-kernel.
    eye = jnp.eye(h0, dtype=x.dtype)
    xb = (x[:, None, None, :] * eye[None, :, :, None]).reshape(
        B, h0, h0 * feature_size)
    call = make_decoder_call(batch=B, feature_size=feature_size,
                             ini_dim=ini_dim, ini_imsize=ini_imsize,
                             us_num=us_num)
    return call(xb, *ops)


# ----------------------------------------------------------------------------
# Parameter preparation (all prep-time, plain JAX / numpy; weights are tiny).
# ----------------------------------------------------------------------------
def fold_bn(gamma, beta, mean, var, eps=1e-5):
    scale = gamma / jnp.sqrt(var + eps)
    shift = beta - mean * scale
    return scale, shift


def build_tconv_mats(wt, scale, shift, hin):
    """ConvTranspose2d(k=4,s=2,p=1) weight (Cin,Cout,K,K) -> (T_wide, Ucat, bias)."""
    wt = np.asarray(wt, np.float32)
    cin, cout, k, _ = wt.shape
    win, wout, hout = hin, 2 * hin, 2 * hin
    w = wt * np.asarray(scale, np.float32)[None, :, None, None]   # fold BN scale
    T = np.zeros((k, win * cin, wout * cout), np.float32)
    U = np.zeros((k, hout, hin), np.float32)
    for ky in range(k):
        for i_sp in range(win):
            for kx in range(k):
                o_sp = 2 * i_sp + kx - 1
                if 0 <= o_sp < wout:
                    T[ky, i_sp * cin:(i_sp + 1) * cin,
                      o_sp * cout:(o_sp + 1) * cout] = w[:, :, ky, kx]
        for i_sp in range(hin):
            o_sp = 2 * i_sp + ky - 1
            if 0 <= o_sp < hout:
                U[ky, o_sp, i_sp] = 1.0
    # Concatenate the ky blocks along the output (lane) dim -> one wide matmul.
    t_wide = np.transpose(T, (1, 0, 2)).reshape(win * cin, k * wout * cout)
    u_cat = np.concatenate([U[ky] for ky in range(k)], axis=1)    # (Hout, K*Hin)
    bias = np.tile(np.asarray(shift, np.float32), wout).reshape(1, wout * cout)
    return jnp.asarray(t_wide), jnp.asarray(u_cat), jnp.asarray(bias)


def build_outconv_mats(wc, hin):
    """Conv2d(k=7,s=1,p=3) weight (Cout,Cin,K,K) -> (Tc_wide, Vcat)."""
    wc = np.asarray(wc, np.float32)
    cout, cin, k, _ = wc.shape
    pad = k // 2
    win = hin
    Tc = np.zeros((cout, k, win * cin, win), np.float32)
    V = np.zeros((k, hin, hin), np.float32)
    for ky in range(k):
        for oy in range(hin):
            iy = oy + ky - pad
            if 0 <= iy < hin:
                V[ky, oy, iy] = 1.0
        for co in range(cout):
            for ix in range(win):
                for kx in range(k):
                    ox = ix - kx + pad
                    if 0 <= ox < win:
                        Tc[co, ky, ix * cin:(ix + 1) * cin, ox] = wc[co, :, ky, kx]
    # Merge the output channels into the matmul N dim: (K, W*C, Cout*Wout).
    tc_wide = np.transpose(Tc, (1, 2, 0, 3)).reshape(k, win * cin, cout * win)
    v_cat = np.concatenate([V[ky] for ky in range(k)], axis=1)    # (Hin, K*Hin)
    return jnp.asarray(tc_wide), jnp.asarray(v_cat)


def prepare_operands(raw, *, feature_size, ini_dim, ini_imsize, us_num, eps=1e-5):
    ops = []
    c0, h0 = ini_dim, ini_imsize
    minor = h0 * c0
    # Linear + BN1d folded; columns permuted from (c,h,w) to (h,w,c) order, then
    # stacked per slab row so a single (H0, H0*F) @ (H0*F, W*C) matmul against
    # the block-diagonal x yields the (H, W*C) image slab directly.
    bn = raw["lin_bn"]
    scale, shift = fold_bn(bn["gamma"], bn["beta"], bn["mean"], bn["var"], eps)
    wl = raw["lin_w"].T * scale[None, :]                # (F, CS)
    bl = raw["lin_b"] * scale + shift                   # (CS,)
    wl = wl.reshape(feature_size, c0, h0, h0).transpose(0, 2, 3, 1) \
           .reshape(feature_size, h0, minor)            # (F, H0, W*C)
    wblk = jnp.transpose(wl, (1, 0, 2)).reshape(h0 * feature_size, minor)
    bl = bl.reshape(c0, h0, h0).transpose(1, 2, 0).reshape(h0, minor)
    ops += [wblk, bl]

    hin = h0
    for i in range(us_num):
        bn = raw[f"up{i}_bn"]
        scale, shift = fold_bn(bn["gamma"], bn["beta"], bn["mean"], bn["var"], eps)
        T, U, bias = build_tconv_mats(raw[f"up{i}_w"], np.asarray(scale),
                                      np.asarray(shift), hin)
        ops += [T, U, bias]
        hin *= 2

    Tc, V = build_outconv_mats(raw["out_w"], hin)
    ops += [Tc, V]
    return ops


# ----------------------------------------------------------------------------
# Pure-JAX reference (eval-mode BN), directly in NCHW like the PyTorch module.
# ----------------------------------------------------------------------------
def reference_forward(x, raw, *, ini_dim, ini_imsize, us_num, eps=1e-5):
    hp = jax.lax.Precision.HIGHEST
    y = jnp.dot(x, raw["lin_w"].T, precision=hp) + raw["lin_b"]
    bn = raw["lin_bn"]
    y = (y - bn["mean"]) / jnp.sqrt(bn["var"] + eps) * bn["gamma"] + bn["beta"]
    y = jnp.maximum(y, 0.0)
    B = x.shape[0]
    h = y.reshape(B, ini_dim, ini_imsize, ini_imsize)
    dn = ("NCHW", "OIHW", "NCHW")
    for i in range(us_num):
        wt = raw[f"up{i}_w"]                              # (Cin, Cout, 4, 4)
        w_eq = jnp.transpose(wt, (1, 0, 2, 3))[:, :, ::-1, ::-1]
        h = jax.lax.conv_general_dilated(
            h, w_eq, window_strides=(1, 1), padding=((2, 2), (2, 2)),
            lhs_dilation=(2, 2), dimension_numbers=dn, precision=hp)
        bn = raw[f"up{i}_bn"]
        h = (h - bn["mean"][None, :, None, None]) \
            / jnp.sqrt(bn["var"][None, :, None, None] + eps) \
            * bn["gamma"][None, :, None, None] + bn["beta"][None, :, None, None]
        h = jnp.maximum(h, 0.0)
    h = jax.lax.conv_general_dilated(
        h, raw["out_w"], window_strides=(1, 1), padding=((3, 3), (3, 3)),
        dimension_numbers=dn, precision=hp)
    return jnp.tanh(h)


def init_raw_params(key, feature_size, ini_dim, ini_imsize, us_num):
    cs = ini_dim * ini_imsize ** 2
    keys = iter(jax.random.split(key, 64))
    raw = {}
    raw["lin_w"] = 0.05 * jax.random.normal(next(keys), (cs, feature_size),
                                            jnp.float32)
    raw["lin_b"] = 0.05 * jax.random.normal(next(keys), (cs,), jnp.float32)
    raw["lin_bn"] = dict(
        gamma=1.0 + 0.1 * jax.random.normal(next(keys), (cs,), jnp.float32),
        beta=0.1 * jax.random.normal(next(keys), (cs,), jnp.float32),
        mean=0.1 * jax.random.normal(next(keys), (cs,), jnp.float32),
        var=jnp.abs(1.0 + 0.1 * jax.random.normal(next(keys), (cs,), jnp.float32)))
    c = ini_dim
    for i in range(us_num):
        co = c // 2
        raw[f"up{i}_w"] = 0.1 * jax.random.normal(next(keys), (c, co, 4, 4),
                                                  jnp.float32)
        raw[f"up{i}_bn"] = dict(
            gamma=1.0 + 0.1 * jax.random.normal(next(keys), (co,), jnp.float32),
            beta=0.1 * jax.random.normal(next(keys), (co,), jnp.float32),
            mean=0.1 * jax.random.normal(next(keys), (co,), jnp.float32),
            var=jnp.abs(1.0 + 0.1 * jax.random.normal(next(keys), (co,),
                                                      jnp.float32)))
        c = co
    raw["out_w"] = 0.1 * jax.random.normal(next(keys), (3, c, 7, 7), jnp.float32)
    return raw


if __name__ == "__main__":
    # Small shapes consistent with the module:
    # feature 32 -> (16, 8, 8) -> (8, 16, 16) -> (4, 32, 32) -> (3, 32, 32)
    feature_size, ini_dim, ini_imsize, us_num = 32, 16, 8, 2
    B = 2

    key = jax.random.PRNGKey(0)
    kx, kp = jax.random.split(key)
    x = jax.random.normal(kx, (B, feature_size), jnp.float32)
    raw = init_raw_params(kp, feature_size, ini_dim, ini_imsize, us_num)
    ops = prepare_operands(raw, feature_size=feature_size, ini_dim=ini_dim,
                           ini_imsize=ini_imsize, us_num=us_num)

    out = decoder_forward(x, ops, feature_size=feature_size, ini_dim=ini_dim,
                          ini_imsize=ini_imsize, us_num=us_num)
    out = jax.block_until_ready(out)

    ref = reference_forward(x, raw, ini_dim=ini_dim, ini_imsize=ini_imsize,
                            us_num=us_num)
    ref = jax.block_until_ready(ref)

    img = ini_imsize * (2 ** us_num)
    assert out.shape == (B, 3, img, img)
    np.testing.assert_allclose(np.asarray(out), np.asarray(ref),
                               atol=2e-3, rtol=2e-3)
    print("KERNEL_OK")
</pallas_src>

<mosaic_0001>
module attributes {stable_mosaic.version = 11 : i64} {
  func.func @_decoder_kernel(%arg0: i32, %arg1: memref<1x8x256xf32, #tpu.memory_space<vmem>>, %arg2: memref<256x128xf32, #tpu.memory_space<vmem>>, %arg3: memref<8x128xf32, #tpu.memory_space<vmem>>, %arg4: memref<128x512xf32, #tpu.memory_space<vmem>>, %arg5: memref<16x32xf32, #tpu.memory_space<vmem>>, %arg6: memref<1x128xf32, #tpu.memory_space<vmem>>, %arg7: memref<128x512xf32, #tpu.memory_space<vmem>>, %arg8: memref<32x64xf32, #tpu.memory_space<vmem>>, %arg9: memref<1x128xf32, #tpu.memory_space<vmem>>, %arg10: memref<7x128x96xf32, #tpu.memory_space<vmem>>, %arg11: memref<32x224xf32, #tpu.memory_space<vmem>>, %arg12: memref<1x3x32x32xf32, #tpu.memory_space<vmem>>, %arg13: memref<32x128xf32, #tpu.memory_space<vmem>>, %arg14: memref<64x128xf32, #tpu.memory_space<vmem>>, %arg15: memref<224x96xf32, #tpu.memory_space<vmem>>) attributes {dimension_semantics = [#tpu.dimension_semantics<parallel>], iteration_bounds = array<i64: 2>, scalar_prefetch = 0 : i64, scratch_operands = 3 : i64, tpu.core_type = #tpu.core_type<tc>, window_params = [{transform_indices = @transform_0, window_bounds = array<i64: 1, 8, 256>}, {pipeline_mode = #tpu.pipeline_mode<synchronous>, transform_indices = @transform_1, window_bounds = array<i64: 256, 128>}, {pipeline_mode = #tpu.pipeline_mode<synchronous>, transform_indices = @transform_2, window_bounds = array<i64: 8, 128>}, {pipeline_mode = #tpu.pipeline_mode<synchronous>, transform_indices = @transform_3, window_bounds = array<i64: 128, 512>}, {pipeline_mode = #tpu.pipeline_mode<synchronous>, transform_indices = @transform_4, window_bounds = array<i64: 16, 32>}, {pipeline_mode = #tpu.pipeline_mode<synchronous>, transform_indices = @transform_5, window_bounds = array<i64: 1, 128>}, {pipeline_mode = #tpu.pipeline_mode<synchronous>, transform_indices = @transform_6, window_bounds = array<i64: 128, 512>}, {pipeline_mode = #tpu.pipeline_mode<synchronous>, transform_indices = @transform_7, window_bounds = array<i64: 32, 64>}, {pipeline_mode = #tpu.pipeline_mode<synchronous>, transform_indices = @transform_8, window_bounds = array<i64: 1, 128>}, {pipeline_mode = #tpu.pipeline_mode<synchronous>, transform_indices = @transform_9, window_bounds = array<i64: 7, 128, 96>}, {pipeline_mode = #tpu.pipeline_mode<synchronous>, transform_indices = @transform_10, window_bounds = array<i64: 32, 224>}, {transform_indices = @transform_11, window_bounds = array<i64: 1, 3, 32, 32>}]} {
    %c0 = arith.constant 0 : index
    %c0_0 = arith.constant 0 : index
    %c0_1 = arith.constant 0 : index
    %0 = vector.load %arg1[%c0, %c0_0, %c0_1] : memref<1x8x256xf32, #tpu.memory_space<vmem>>, vector<1x8x256xf32>
    %1 = vector.shape_cast %0 : vector<1x8x256xf32> to vector<8x256xf32>
    %c0_2 = arith.constant 0 : index
    %c0_3 = arith.constant 0 : index
    %2 = vector.load %arg2[%c0_2, %c0_3] : memref<256x128xf32, #tpu.memory_space<vmem>>, vector<256x128xf32>
    %cst = arith.constant dense<0.000000e+00> : vector<8x128xf32>
    %3 = tpu.matmul %1, %2, %cst {dimension_numbers = #tpu.dot_dimension_numbers<[1], [0], [0], [1], [0, 0, 1, 1], [], []>} : vector<8x256xf32>, vector<256x128xf32>, vector<8x128xf32> -> vector<8x128xf32>
    %c0_4 = arith.constant 0 : index
    %c0_5 = arith.constant 0 : index
    %4 = vector.load %arg3[%c0_4, %c0_5] : memref<8x128xf32, #tpu.memory_space<vmem>>, vector<8x128xf32>
    %5 = arith.addf %3, %4 : vector<8x128xf32>
    %cst_6 = arith.constant 0.000000e+00 : f32
    %6 = vector.broadcast %cst_6 : f32 to vector<8x128xf32>
    %7 = arith.maximumf %5, %6 : vector<8x128xf32>
    %c0_7 = arith.constant 0 : index
    %c0_8 = arith.constant 0 : index
    %8 = vector.load %arg4[%c0_7, %c0_8] : memref<128x512xf32, #tpu.memory_space<vmem>>, vector<128x512xf32>
    %cst_9 = arith.constant dense<0.000000e+00> : vector<8x512xf32>
    %9 = tpu.matmul %7, %8, %cst_9 {dimension_numbers = #tpu.dot_dimension_numbers<[1], [0], [0], [1], [0, 0, 1, 1], [], []>} : vector<8x128xf32>, vector<128x512xf32>, vector<8x512xf32> -> vector<8x512xf32>
    %10 = vector.extract_strided_slice %9 {offsets = [0, 0], sizes = [8, 128], strides = [1, 1]} : vector<8x512xf32> to vector<8x128xf32>
    %c0_10 = arith.constant 0 : index
    %c0_11 = arith.constant 0 : index
    %11 = vector.load %arg13[%c0_10, %c0_11] : memref<32x128xf32, #tpu.memory_space<vmem>>, vector<8x128xf32>
    tpu.vector_store %arg13[%c0_10, %c0_11], %10 {strides = array<i32>} : memref<32x128xf32, #tpu.memory_space<vmem>>, vector<8x128xf32>,
    %12 = vector.extract_strided_slice %9 {offsets = [0, 128], sizes = [8, 128], strides = [1, 1]} : vector<8x512xf32> to vector<8x128xf32>
    %c8 = arith.constant 8 : index
    %c0_12 = arith.constant 0 : index
    %13 = vector.load %arg13[%c8, %c0_12] : memref<32x128xf32, #tpu.memory_space<vmem>>, vector<8x128xf32>
    tpu.vector_store %arg13[%c8, %c0_12], %12 {strides = array<i32>} : memref<32x128xf32, #tpu.memory_space<vmem>>, vector<8x128xf32>,
    %14 = vector.extract_strided_slice %9 {offsets = [0, 256], sizes = [8, 128], strides = [1, 1]} : vector<8x512xf32> to vector<8x128xf32>
    %c16 = arith.constant 16 : index
    %c0_13 = arith.constant 0 : index
    %15 = vector.load %arg13[%c16, %c0_13] : memref<32x128xf32, #tpu.memory_space<vmem>>, vector<8x128xf32>
    tpu.vector_store %arg13[%c16, %c0_13], %14 {strides = array<i32>} : memref<32x128xf32, #tpu.memory_space<vmem>>, vector<8x128xf32>,
    %16 = vector.extract_strided_slice %9 {offsets = [0, 384], sizes = [8, 128], strides = [1, 1]} : vector<8x512xf32> to vector<8x128xf32>
    %c24 = arith.constant 24 : index
    %c0_14 = arith.constant 0 : index
    %17 = vector.load %arg13[%c24, %c0_14] : memref<32x128xf32, #tpu.memory_space<vmem>>, vector<8x128xf32>
    tpu.vector_store %arg13[%c24, %c0_14], %16 {strides = array<i32>} : memref<32x128xf32, #tpu.memory_space<vmem>>, vector<8x128xf32>,
    %c0_15 = arith.constant 0 : index
    %c0_16 = arith.constant 0 : index
    %18 = vector.load %arg5[%c0_15, %c0_16] : memref<16x32xf32, #tpu.memory_space<vmem>>, vector<16x32xf32>
    %c0_17 = arith.constant 0 : index
    %c0_18 = arith.constant 0 : index
    %19 = vector.load %arg13[%c0_17, %c0_18] : memref<32x128xf32, #tpu.memory_space<vmem>>, vector<32x128xf32>
    %cst_19 = arith.constant dense<0.000000e+00> : vector<16x128xf32>
    %20 = tpu.matmul %18, %19, %cst_19 {dimension_numbers = #tpu.dot_dimension_numbers<[1], [0], [0], [1], [0, 0, 1, 1], [], []>} : vector<16x32xf32>, vector<32x128xf32>, vector<16x128xf32> -> vector<16x128xf32>
    %c0_20 = arith.constant 0 : index
    %c0_21 = arith.constant 0 : index
    %21 = vector.load %arg6[%c0_20, %c0_21] : memref<1x128xf32, #tpu.memory_space<vmem>>, vector<1x128xf32>
    %22 = vector.broadcast %21 : vector<1x128xf32> to vector<16x128xf32>
    %23 = arith.addf %20, %22 : vector<16x128xf32>
    %cst_22 = arith.constant 0.000000e+00 : f32
    %24 = vector.broadcast %cst_22 : f32 to vector<16x128xf32>
    %25 = arith.maximumf %23, %24 : vector<16x128xf32>
    %c0_23 = arith.constant 0 : index
    %c0_24 = arith.constant 0 : index
    %26 = vector.load %arg7[%c0_23, %c0_24] : memref<128x512xf32, #tpu.memory_space<vmem>>, vector<128x512xf32>
    %cst_25 = arith.constant dense<0.000000e+00> : vector<16x512xf32>
    %27 = tpu.matmul %25, %26, %cst_25 {dimension_numbers = #tpu.dot_dimension_numbers<[1], [0], [0], [1], [0, 0, 1, 1], [], []>} : vector<16x128xf32>, vector<128x512xf32>, vector<16x512xf32> -> vector<16x512xf32>
    %28 = vector.extract_strided_slice %27 {offsets = [0, 0], sizes = [16, 128], strides = [1, 1]} : vector<16x512xf32> to vector<16x128xf32>
    %c0_26 = arith.constant 0 : index
    %c0_27 = arith.constant 0 : index
    %29 = vector.load %arg14[%c0_26, %c0_27] : memref<64x128xf32, #tpu.memory_space<vmem>>, vector<16x128xf32>
    tpu.vector_store %arg14[%c0_26, %c0_27], %28 {strides = array<i32>} : memref<64x128xf32, #tpu.memory_space<vmem>>, vector<16x128xf32>,
    %30 = vector.extract_strided_slice %27 {offsets = [0, 128], sizes = [16, 128], strides = [1, 1]} : vector<16x512xf32> to vector<16x128xf32>
    %c16_28 = arith.constant 16 : index
    %c0_29 = arith.constant 0 : index
    %31 = vector.load %arg14[%c16_28, %c0_29] : memref<64x128xf32, #tpu.memory_space<vmem>>, vector<16x128xf32>
    tpu.vector_store %arg14[%c16_28, %c0_29], %30 {strides = array<i32>} : memref<64x128xf32, #tpu.memory_space<vmem>>, vector<16x128xf32>,
    %32 = vector.extract_strided_slice %27 {offsets = [0, 256], sizes = [16, 128], strides = [1, 1]} : vector<16x512xf32> to vector<16x128xf32>
    %c32 = arith.constant 32 : index
    %c0_30 = arith.constant 0 : index
    %33 = vector.load %arg14[%c32, %c0_30] : memref<64x128xf32, #tpu.memory_space<vmem>>, vector<16x128xf32>
    tpu.vector_store %arg14[%c32, %c0_30], %32 {strides = array<i32>} : memref<64x128xf32, #tpu.memory_space<vmem>>, vector<16x128xf32>,
    %34 = vector.extract_strided_slice %27 {offsets = [0, 384], sizes = [16, 128], strides = [1, 1]} : vector<16x512xf32> to vector<16x128xf32>
    %c48 = arith.constant 48 : index
    %c0_31 = arith.constant 0 : index
    %35 = vector.load %arg14[%c48, %c0_31] : memref<64x128xf32, #tpu.memory_space<vmem>>, vector<16x128xf32>
    tpu.vector_store %arg14[%c48, %c0_31], %34 {strides = array<i32>} : memref<64x128xf32, #tpu.memory_space<vmem>>, vector<16x128xf32>,
    %c0_32 = arith.constant 0 : index
    %c0_33 = arith.constant 0 : index
    %36 = vector.load %arg8[%c0_32, %c0_33] : memref<32x64xf32, #tpu.memory_space<vmem>>, vector<32x64xf32>
    %c0_34 = arith.constant 0 : index
    %c0_35 = arith.constant 0 : index
    %37 = vector.load %arg14[%c0_34, %c0_35] : memref<64x128xf32, #tpu.memory_space<vmem>>, vector<64x128xf32>
    %cst_36 = arith.constant dense<0.000000e+00> : vector<32x128xf32>
    %38 = tpu.matmul %36, %37, %cst_36 {dimension_numbers = #tpu.dot_dimension_numbers<[1], [0], [0], [1], [0, 0, 1, 1], [], []>} : vector<32x64xf32>, vector<64x128xf32>, vector<32x128xf32> -> vector<32x128xf32>
    %c0_37 = arith.constant 0 : index
    %c0_38 = arith.constant 0 : index
    %39 = vector.load %arg9[%c0_37, %c0_38] : memref<1x128xf32, #tpu.memory_space<vmem>>, vector<1x128xf32>
    %40 = vector.broadcast %39 : vector<1x128xf32> to vector<32x128xf32>
    %41 = arith.addf %38, %40 : vector<32x128xf32>
    %cst_39 = arith.constant 0.000000e+00 : f32
    %42 = vector.broadcast %cst_39 : f32 to vector<32x128xf32>
    %43 = arith.maximumf %41, %42 : vector<32x128xf32>
    %c0_40 = arith.constant 0 : index
    %c0_41 = arith.constant 0 : index
    %c0_42 = arith.constant 0 : index
    %44 = vector.load %arg10[%c0_40, %c0_41, %c0_42] : memref<7x128x96xf32, #tpu.memory_space<vmem>>, vector<1x128x96xf32>
    %45 = vector.shape_cast %44 : vector<1x128x96xf32> to vector<128x96xf32>
    %cst_43 = arith.constant dense<0.000000e+00> : vector<32x96xf32>
    %46 = tpu.matmul %43, %45, %cst_43 {dimension_numbers = #tpu.dot_dimension_numbers<[1], [0], [0], [1], [0, 0, 1, 1], [], []>} : vector<32x128xf32>, vector<128x96xf32>, vector<32x96xf32> -> vector<32x96xf32>
    %c0_44 = arith.constant 0 : index
    %c0_45 = arith.constant 0 : index
    %47 = vector.load %arg15[%c0_44, %c0_45] : memref<224x96xf32, #tpu.memory_space<vmem>>, vector<32x96xf32>
    tpu.vector_store %arg15[%c0_44, %c0_45], %46 {strides = array<i32>} : memref<224x96xf32, #tpu.memory_space<vmem>>, vector<32x96xf32>,
    %c1 = arith.constant 1 : index
    %c0_46 = arith.constant 0 : index
    %c0_47 = arith.constant 0 : index
    %48 = vector.load %arg10[%c1, %c0_46, %c0_47] : memref<7x128x96xf32, #tpu.memory_space<vmem>>, vector<1x128x96xf32>
    %49 = vector.shape_cast %48 : vector<1x128x96xf32> to vector<128x96xf32>
    %cst_48 = arith.constant dense<0.000000e+00> : vector<32x96xf32>
    %50 = tpu.matmul %43, %49, %cst_48 {dimension_numbers = #tpu.dot_dimension_numbers<[1], [0], [0], [1], [0, 0, 1, 1], [], []>} : vector<32x128xf32>, vector<128x96xf32>, vector<32x96xf32> -> vector<32x96xf32>
    %c32_49 = arith.constant 32 : index
    %c0_50 = arith.constant 0 : index
    %51 = vector.load %arg15[%c32_49, %c0_50] : memref<224x96xf32, #tpu.memory_space<vmem>>, vector<32x96xf32>
    tpu.vector_store %arg15[%c32_49, %c0_50], %50 {strides = array<i32>} : memref<224x96xf32, #tpu.memory_space<vmem>>, vector<32x96xf32>,
    %c2 = arith.constant 2 : index
    %c0_51 = arith.constant 0 : index
    %c0_52 = arith.constant 0 : index
    %52 = vector.load %arg10[%c2, %c0_51, %c0_52] : memref<7x128x96xf32, #tpu.memory_space<vmem>>, vector<1x128x96xf32>
    %53 = vector.shape_cast %52 : vector<1x128x96xf32> to vector<128x96xf32>
    %cst_53 = arith.constant dense<0.000000e+00> : vector<32x96xf32>
    %54 = tpu.matmul %43, %53, %cst_53 {dimension_numbers = #tpu.dot_dimension_numbers<[1], [0], [0], [1], [0, 0, 1, 1], [], []>} : vector<32x128xf32>, vector<128x96xf32>, vector<32x96xf32> -> vector<32x96xf32>
    %c64 = arith.constant 64 : index
    %c0_54 = arith.constant 0 : index
    %55 = vector.load %arg15[%c64, %c0_54] : memref<224x96xf32, #tpu.memory_space<vmem>>, vector<32x96xf32>
    tpu.vector_store %arg15[%c64, %c0_54], %54 {strides = array<i32>} : memref<224x96xf32, #tpu.memory_space<vmem>>, vector<32x96xf32>,
    %c3 = arith.constant 3 : index
    %c0_55 = arith.constant 0 : index
    %c0_56 = arith.constant 0 : index
    %56 = vector.load %arg10[%c3, %c0_55, %c0_56] : memref<7x128x96xf32, #tpu.memory_space<vmem>>, vector<1x128x96xf32>
    %57 = vector.shape_cast %56 : vector<1x128x96xf32> to vector<128x96xf32>
    %cst_57 = arith.constant dense<0.000000e+00> : vector<32x96xf32>
    %58 = tpu.matmul %43, %57, %cst_57 {dimension_numbers = #tpu.dot_dimension_numbers<[1], [0], [0], [1], [0, 0, 1, 1], [], []>} : vector<32x128xf32>, vector<128x96xf32>, vector<32x96xf32> -> vector<32x96xf32>
    %c96 = arith.constant 96 : index
    %c0_58 = arith.constant 0 : index
    %59 = vector.load %arg15[%c96, %c0_58] : memref<224x96xf32, #tpu.memory_space<vmem>>, vector<32x96xf32>
    tpu.vector_store %arg15[%c96, %c0_58], %58 {strides = array<i32>} : memref<224x96xf32, #tpu.memory_space<vmem>>, vector<32x96xf32>,
    %c4 = arith.constant 4 : index
    %c0_59 = arith.constant 0 : index
    %c0_60 = arith.constant 0 : index
    %60 = vector.load %arg10[%c4, %c0_59, %c0_60] : memref<7x128x96xf32, #tpu.memory_space<vmem>>, vector<1x128x96xf32>
    %61 = vector.shape_cast %60 : vector<1x128x96xf32> to vector<128x96xf32>
    %cst_61 = arith.constant dense<0.000000e+00> : vector<32x96xf32>
    %62 = tpu.matmul %43, %61, %cst_61 {dimension_numbers = #tpu.dot_dimension_numbers<[1], [0], [0], [1], [0, 0, 1, 1], [], []>} : vector<32x128xf32>, vector<128x96xf32>, vector<32x96xf32> -> vector<32x96xf32>
    %c128 = arith.constant 128 : index
    %c0_62 = arith.constant 0 : index
    %63 = vector.load %arg15[%c128, %c0_62] : memref<224x96xf32, #tpu.memory_space<vmem>>, vector<32x96xf32>
    tpu.vector_store %arg15[%c128, %c0_62], %62 {strides = array<i32>} : memref<224x96xf32, #tpu.memory_space<vmem>>, vector<32x96xf32>,
    %c5 = arith.constant 5 : index
    %c0_63 = arith.constant 0 : index
    %c0_64 = arith.constant 0 : index
    %64 = vector.load %arg10[%c5, %c0_63, %c0_64] : memref<7x128x96xf32, #tpu.memory_space<vmem>>, vector<1x128x96xf32>
    %65 = vector.shape_cast %64 : vector<1x128x96xf32> to vector<128x96xf32>
    %cst_65 = arith.constant dense<0.000000e+00> : vector<32x96xf32>
    %66 = tpu.matmul %43, %65, %cst_65 {dimension_numbers = #tpu.dot_dimension_numbers<[1], [0], [0], [1], [0, 0, 1, 1], [], []>} : vector<32x128xf32>, vector<128x96xf32>, vector<32x96xf32> -> vector<32x96xf32>
    %c160 = arith.constant 160 : index
    %c0_66 = arith.constant 0 : index
    %67 = vector.load %arg15[%c160, %c0_66] : memref<224x96xf32, #tpu.memory_space<vmem>>, vector<32x96xf32>
    tpu.vector_store %arg15[%c160, %c0_66], %66 {strides = array<i32>} : memref<224x96xf32, #tpu.memory_space<vmem>>, vector<32x96xf32>,
    %c6 = arith.constant 6 : index
    %c0_67 = arith.constant 0 : index
    %c0_68 = arith.constant 0 : index
    %68 = vector.load %arg10[%c6, %c0_67, %c0_68] : memref<7x128x96xf32, #tpu.memory_space<vmem>>, vector<1x128x96xf32>
    %69 = vector.shape_cast %68 : vector<1x128x96xf32> to vector<128x96xf32>
    %cst_69 = arith.constant dense<0.000000e+00> : vector<32x96xf32>
    %70 = tpu.matmul %43, %69, %cst_69 {dimension_numbers = #tpu.dot_dimension_numbers<[1], [0], [0], [1], [0, 0, 1, 1], [], []>} : vector<32x128xf32>, vector<128x96xf32>, vector<32x96xf32> -> vector<32x96xf32>
    %c192 = arith.constant 192 : index
    %c0_70 = arith.constant 0 : index
    %71 = vector.load %arg15[%c192, %c0_70] : memref<224x96xf32, #tpu.memory_space<vmem>>, vector<32x96xf32>
    tpu.vector_store %arg15[%c192, %c0_70], %70 {strides = array<i32>} : memref<224x96xf32, #tpu.memory_space<vmem>>, vector<32x96xf32>,
    %c0_71 = arith.constant 0 : index
    %c0_72 = arith.constant 0 : index
    %72 = vector.load %arg11[%c0_71, %c0_72] : memref<32x224xf32, #tpu.memory_space<vmem>>, vector<32x224xf32>
    %c0_73 = arith.constant 0 : index
    %c0_74 = arith.constant 0 : index
    %73 = vector.load %arg15[%c0_73, %c0_74] : memref<224x96xf32, #tpu.memory_space<vmem>>, vector<224x96xf32>
    %cst_75 = arith.constant dense<0.000000e+00> : vector<32x96xf32>
    %74 = tpu.matmul %72, %73, %cst_75 {dimension_numbers = #tpu.dot_dimension_numbers<[1], [0], [0], [1], [0, 0, 1, 1], [], []>} : vector<32x224xf32>, vector<224x96xf32>, vector<32x96xf32> -> vector<32x96xf32>
    %75 = math.tanh %74 : vector<32x96xf32>
    %76 = vector.extract_strided_slice %75 {offsets = [0, 0], sizes = [32, 32], strides = [1, 1]} : vector<32x96xf32> to vector<32x32xf32>
    %c0_76 = arith.constant 0 : index
    %c0_77 = arith.constant 0 : index
    %c0_78 = arith.constant 0 : index
    %c0_79 = arith.constant 0 : index
    %77 = vector.load %arg12[%c0_76, %c0_77, %c0_78, %c0_79] : memref<1x3x32x32xf32, #tpu.memory_space<vmem>>, vector<1x1x32x32xf32>
    %78 = vector.shape_cast %77 : vector<1x1x32x32xf32> to vector<32x32xf32>
    %79 = vector.shape_cast %76 : vector<32x32xf32> to vector<1x1x32x32xf32>
    tpu.vector_store %arg12[%c0_76, %c0_77, %c0_78, %c0_79], %79 {strides = array<i32>} : memref<1x3x32x32xf32, #tpu.memory_space<vmem>>, vector<1x1x32x32xf32>,
    %80 = vector.extract_strided_slice %75 {offsets = [0, 32], sizes = [32, 32], strides = [1, 1]} : vector<32x96xf32> to vector<32x32xf32>
    %c0_80 = arith.constant 0 : index
    %c1_81 = arith.constant 1 : index
    %c0_82 = arith.constant 0 : index
    %c0_83 = arith.constant 0 : index
    %81 = vector.load %arg12[%c0_80, %c1_81, %c0_82, %c0_83] : memref<1x3x32x32xf32, #tpu.memory_space<vmem>>, vector<1x1x32x32xf32>
    %82 = vector.shape_cast %81 : vector<1x1x32x32xf32> to vector<32x32xf32>
    %83 = vector.shape_cast %80 : vector<32x32xf32> to vector<1x1x32x32xf32>
    tpu.vector_store %arg12[%c0_80, %c1_81, %c0_82, %c0_83], %83 {strides = array<i32>} : memref<1x3x32x32xf32, #tpu.memory_space<vmem>>, vector<1x1x32x32xf32>,
    %84 = vector.extract_strided_slice %75 {offsets = [0, 64], sizes = [32, 32], strides = [1, 1]} : vector<32x96xf32> to vector<32x32xf32>
    %c0_84 = arith.constant 0 : index
    %c2_85 = arith.constant 2 : index
    %c0_86 = arith.constant 0 : index
    %c0_87 = arith.constant 0 : index
    %85 = vector.load %arg12[%c0_84, %c2_85, %c0_86, %c0_87] : memref<1x3x32x32xf32, #tpu.memory_space<vmem>>, vector<1x1x32x32xf32>
    %86 = vector.shape_cast %85 : vector<1x1x32x32xf32> to vector<32x32xf32>
    %87 = vector.shape_cast %84 : vector<32x32xf32> to vector<1x1x32x32xf32>
    tpu.vector_store %arg12[%c0_84, %c2_85, %c0_86, %c0_87], %87 {strides = array<i32>} : memref<1x3x32x32xf32, #tpu.memory_space<vmem>>, vector<1x1x32x32xf32>,
    return
  }
  func.func @transform_0(%arg0: i32) -> (i32, i32, i32) {
    %c0_i32 = arith.constant 0 : i32
    %c0_i32_0 = arith.constant 0 : i32
    %c0_i32_1 = arith.constant 0 : i32
    return %arg0, %c0_i32, %c0_i32_0 : i32, i32, i32
  }
  func.func @transform_1(%arg0: i32) -> (i32, i32) {
    %c0_i32 = arith.constant 0 : i32
    %c0_i32_0 = arith.constant 0 : i32
    %c0_i32_1 = arith.constant 0 : i32
    return %c0_i32, %c0_i32_0 : i32, i32
  }
  func.func @transform_2(%arg0: i32) -> (i32, i32) {
    %c0_i32 = arith.constant 0 : i32
    %c0_i32_0 = arith.constant 0 : i32
    %c0_i32_1 = arith.constant 0 : i32
    return %c0_i32, %c0_i32_0 : i32, i32
  }
  func.func @transform_3(%arg0: i32) -> (i32, i32) {
    %c0_i32 = arith.constant 0 : i32
    %c0_i32_0 = arith.constant 0 : i32
    %c0_i32_1 = arith.constant 0 : i32
    return %c0_i32, %c0_i32_0 : i32, i32
  }
  func.func @transform_4(%arg0: i32) -> (i32, i32) {
    %c0_i32 = arith.constant 0 : i32
    %c0_i32_0 = arith.constant 0 : i32
    %c0_i32_1 = arith.constant 0 : i32
    return %c0_i32, %c0_i32_0 : i32, i32
  }
  func.func @transform_5(%arg0: i32) -> (i32, i32) {
    %c0_i32 = arith.constant 0 : i32
    %c0_i32_0 = arith.constant 0 : i32
    %c0_i32_1 = arith.constant 0 : i32
    return %c0_i32, %c0_i32_0 : i32, i32
  }
  func.func @transform_6(%arg0: i32) -> (i32, i32) {
    %c0_i32 = arith.constant 0 : i32
    %c0_i32_0 = arith.constant 0 : i32
    %c0_i32_1 = arith.constant 0 : i32
    return %c0_i32, %c0_i32_0 : i32, i32
  }
  func.func @transform_7(%arg0: i32) -> (i32, i32) {
    %c0_i32 = arith.constant 0 : i32
    %c0_i32_0 = arith.constant 0 : i32
    %c0_i32_1 = arith.constant 0 : i32
    return %c0_i32, %c0_i32_0 : i32, i32
  }
  func.func @transform_8(%arg0: i32) -> (i32, i32) {
    %c0_i32 = arith.constant 0 : i32
    %c0_i32_0 = arith.constant 0 : i32
    %c0_i32_1 = arith.constant 0 : i32
    return %c0_i32, %c0_i32_0 : i32, i32
  }
  func.func @transform_9(%arg0: i32) -> (i32, i32, i32) {
    %c0_i32 = arith.constant 0 : i32
    %c0_i32_0 = arith.constant 0 : i32
    %c0_i32_1 = arith.constant 0 : i32
    %c0_i32_2 = arith.constant 0 : i32
    return %c0_i32, %c0_i32_0, %c0_i32_1 : i32, i32, i32
  }
  func.func @transform_10(%arg0: i32) -> (i32, i32) {
    %c0_i32 = arith.constant 0 : i32
    %c0_i32_0 = arith.constant 0 : i32
    %c0_i32_1 = arith.constant 0 : i32
    return %c0_i32, %c0_i32_0 : i32, i32
  }
  func.func @transform_11(%arg0: i32) -> (i32, i32, i32, i32) {
    %c0_i32 = arith.constant 0 : i32
    %c0_i32_0 = arith.constant 0 : i32
    %c0_i32_1 = arith.constant 0 : i32
    %c0_i32_2 = arith.constant 0 : i32
    return %arg0, %c0_i32, %c0_i32_0, %c0_i32_1 : i32, i32, i32, i32
  }
}

</mosaic_0001>

<llo_original>
// kernel: tpu_custom_call.1
$region0: #{tpu_custom_call.1}
  #allocation0 [shape = 'u32[]', space=smem, size = 0x4, offset = 0x4, fixed_abs, tag = 'smem constant byte address 0x4 - core index']
  #allocation1 [shape = 'u32[144,128]{1,0:T(1,128)}', space=vmem, size = 0x12000, scoped, tag = 'internal scratch']
  #allocation2 [shape = 'f32[32,128]{1,0:T(8,128)}', space=vmem, size = 0x4000, scoped, tag = 'scratch operand']
  #allocation3 [shape = 'f32[64,128]{1,0:T(8,128)}', space=vmem, size = 0x8000, scoped, tag = 'scratch operand']
  #allocation4 [shape = 'f32[224,96]{1,0:T(8,128)}', space=vmem, size = 0x1c000, scoped, tag = 'scratch operand']
  %s0 = inlined_call_operand.vmem [shape: f32[2,8,256], index: 0, kind: input, shape index: {}]
  %s1 = inlined_call_operand.vmem [shape: f32[256,128], index: 1, kind: input, shape index: {}]
  %s2 = inlined_call_operand.vmem [shape: f32[8,128], index: 2, kind: input, shape index: {}]
  %s3 = inlined_call_operand.vmem [shape: f32[128,512], index: 3, kind: input, shape index: {}]
  %s4 = inlined_call_operand.vmem [shape: f32[16,32], index: 4, kind: input, shape index: {}]
  %s5 = inlined_call_operand.vmem [shape: f32[1,128], index: 5, kind: input, shape index: {}]
  %s6 = inlined_call_operand.vmem [shape: f32[128,512], index: 6, kind: input, shape index: {}]
  %s7 = inlined_call_operand.vmem [shape: f32[32,64], index: 7, kind: input, shape index: {}]
  %s8 = inlined_call_operand.vmem [shape: f32[1,128], index: 8, kind: input, shape index: {}]
  %s9 = inlined_call_operand.vmem [shape: f32[7,128,96], index: 9, kind: input, shape index: {}]
  %s10 = inlined_call_operand.vmem [shape: f32[32,224], index: 10, kind: input, shape index: {}]
  %s11 = inlined_call_operand.hbm [shape: f32[2,3,32,32], index: 11, kind: output, shape index: {}]
  %s12 = sld [smem:[#allocation0]]
  $region77: #{tpu_custom_call.1} parent=0
    _
  %s14 = ssub.s32 1, %s12
  %s15 = scalar_select 0, %s14, %s12
  $region1: #{tpu_custom_call.1} parent=0
    #allocation5 [shape = 'u8[98304]{0}', space=vmem, size = 0x18000, scoped, tag = 'output window, operand 0']
    #allocation6 [shape = 's32[2]{0}', space=sflag, size = 0x8, scoped, tag = 'scoped memory for tpu_custom_call.1']
    %16 = vsyncpa [#allocation6], 0
    %s17 = scalar_lea.sflag [#allocation6], 1
    %18 = vsyncpa %s17, 0
    loop: start=0, step=1, limit=4
    $region2: #{tpu_custom_call.1} parent=1 // loop_pre_header
      _
    $region3: #{tpu_custom_call.1} parent=1 // loop_header
      %s20 = sphi 0, %s24
      %p21 = scmp.ge.s32.totalorder %s20, 4
      %s30 = sphi 0, %s32
      %s33 = sphi 0, %s30
      %s34 = sphi 0, %s33
      %s50 = sphi 0, %s34
      %s54 = sphi 0, %s54
      %s56 = sphi 0, %s54
      %s57 = sphi 0, %s56
      %s71 = sphi 0, %s57
      %s75 = sphi 0, %s75
      %s77 = sphi 0, %s75
      %s78 = sphi 0, %s77
      %s92 = sphi 0, %s78
      %s96 = sphi 0, %s96
      %s98 = sphi 0, %s96
      %s99 = sphi 0, %s98
      %s113 = sphi 0, %s99
      %s117 = sphi 0, %s117
      %s119 = sphi 0, %s117
      %s120 = sphi 0, %s119
      %s134 = sphi 0, %s120
      %s138 = sphi 0, %s138
      %s140 = sphi 0, %s138
      %s141 = sphi 0, %s140
      %s155 = sphi 0, %s141
      %s159 = sphi 0, %s159
      %s161 = sphi 0, %s159
      %s162 = sphi 0, %s161
      %s176 = sphi 0, %s162
      %s180 = sphi 0, %s180
      %s182 = sphi 0, %s180
      %s183 = sphi 0, %s182
      %s197 = sphi 0, %s183
      %s201 = sphi 0, %s201
      %s203 = sphi 0, %s201
      %s204 = sphi 0, %s203
      %s218 = sphi 0, %s204
      %s222 = sphi 0, %s222
      %s224 = sphi 0, %s222
      %s225 = sphi 0, %s224
      %s239 = sphi 0, %s225
      %s243 = sphi 0, %s243
      %s245 = sphi 0, %s243
      %s246 = sphi 0, %s245
      %s260 = sphi 0, %s246
      %s266 = sphi 0, %s268
      %s269 = sphi 0, %s266
      %s270 = sphi 0, %s269
      %s286 = sphi 0, %s270
    $region4: #{tpu_custom_call.1} parent=1 // loop_header_branch
      %23 = sbr.rel (%p21) target = $region8
    $region5: #{tpu_custom_call.1} parent=1 // loop_body
      %s25 = ssub.s32 %s20, 1
      %s26 = ssub.s32 %s20, 2
      %s27 = sadd.s32 %s20, 1
      %s28 = ssub.s32 %s20, %s27
      %p29 = scmp.eq.s32.totalorder %s28, 0
      %s31 = sadd.s32 %s30, 1
      %s32 = scalar_select %p29, %s30, %s31
      %p35 = pneg %p29
      %p36 = scmp.eq.s32.totalorder %s20, 1
      %p37 = por %p35, %p36
      %p38 = scmp.ne.s32.totalorder %s30, %s33
      %p39 = scmp.eq.s32.totalorder %s20, 0
      %p40 = por %p38, %p39
      %p41 = scmp.ne.s32.totalorder %s30, %s33
      %p42 = scmp.eq.s32.totalorder %s25, 1
      %p43 = por %p41, %p42
      %p44 = scmp.ne.s32.totalorder %s33, %s34
      %p45 = scmp.eq.s32.totalorder %s25, 0
      %p46 = por %p44, %p45
      %p47 = scmp.ne.s32.totalorder %s33, %s34
      %p48 = scmp.eq.s32.totalorder %s26, 1
      %p49 = por %p47, %p48
      %p51 = scmp.ne.s32.totalorder %s34, %s50
      %p52 = scmp.eq.s32.totalorder %s26, 0
      %p53 = por %p51, %p52
      %s55 = sadd.s32 %s54, 1
      %p58 = scmp.eq.s32.totalorder %s20, 1
      %p59 = scmp.ne.s32.totalorder %s54, %s56
      %p60 = scmp.eq.s32.totalorder %s20, 0
      %p61 = por %p59, %p60
      %p62 = scmp.ne.s32.totalorder %s54, %s56
      %p63 = scmp.eq.s32.totalorder %s25, 1
      %p64 = por %p62, %p63
      %p65 = scmp.ne.s32.totalorder %s56, %s57
      %p66 = scmp.eq.s32.totalorder %s25, 0
      %p67 = por %p65, %p66
      %p68 = scmp.ne.s32.totalorder %s56, %s57
      %p69 = scmp.eq.s32.totalorder %s26, 1
      %p70 = por %p68, %p69
      %p72 = scmp.ne.s32.totalorder %s57, %s71
      %p73 = scmp.eq.s32.totalorder %s26, 0
      %p74 = por %p72, %p73
      %s76 = sadd.s32 %s75, 1
      %p79 = scmp.eq.s32.totalorder %s20, 1
      %p80 = scmp.ne.s32.totalorder %s75, %s77
      %p81 = scmp.eq.s32.totalorder %s20, 0
      %p82 = por %p80, %p81
      %p83 = scmp.ne.s32.totalorder %s75, %s77
      %p84 = scmp.eq.s32.totalorder %s25, 1
      %p85 = por %p83, %p84
      %p86 = scmp.ne.s32.totalorder %s77, %s78
      %p87 = scmp.eq.s32.totalorder %s25, 0
      %p88 = por %p86, %p87
      %p89 = scmp.ne.s32.totalorder %s77, %s78
      %p90 = scmp.eq.s32.totalorder %s26, 1
      %p91 = por %p89, %p90
      %p93 = scmp.ne.s32.totalorder %s78, %s92
      %p94 = scmp.eq.s32.totalorder %s26, 0
      %p95 = por %p93, %p94
      %s97 = sadd.s32 %s96, 1
      %p100 = scmp.eq.s32.totalorder %s20, 1
      %p101 = scmp.ne.s32.totalorder %s96, %s98
      %p102 = scmp.eq.s32.totalorder %s20, 0
      %p103 = por %p101, %p102
      %p104 = scmp.ne.s32.totalorder %s96, %s98
      %p105 = scmp.eq.s32.totalorder %s25, 1
      %p106 = por %p104, %p105
      %p107 = scmp.ne.s32.totalorder %s98, %s99
      %p108 = scmp.eq.s32.totalorder %s25, 0
      %p109 = por %p107, %p108
      %p110 = scmp.ne.s32.totalorder %s98, %s99
      %p111 = scmp.eq.s32.totalorder %s26, 1
      %p112 = por %p110, %p111
      %p114 = scmp.ne.s32.totalorder %s99, %s113
      %p115 = scmp.eq.s32.totalorder %s26, 0
      %p116 = por %p114, %p115
      %s118 = sadd.s32 %s117, 1
      %p121 = scmp.eq.s32.totalorder %s20, 1
      %p122 = scmp.ne.s32.totalorder %s117, %s119
      %p123 = scmp.eq.s32.totalorder %s20, 0
      %p124 = por %p122, %p123
      %p125 = scmp.ne.s32.totalorder %s117, %s119
      %p126 = scmp.eq.s32.totalorder %s25, 1
      %p127 = por %p125, %p126
      %p128 = scmp.ne.s32.totalorder %s119, %s120
      %p129 = scmp.eq.s32.totalorder %s25, 0
      %p130 = por %p128, %p129
      %p131 = scmp.ne.s32.totalorder %s119, %s120
      %p132 = scmp.eq.s32.totalorder %s26, 1
      %p133 = por %p131, %p132
      %p135 = scmp.ne.s32.totalorder %s120, %s134
      %p136 = scmp.eq.s32.totalorder %s26, 0
      %p137 = por %p135, %p136
      %s139 = sadd.s32 %s138, 1
      %p142 = scmp.eq.s32.totalorder %s20, 1
      %p143 = scmp.ne.s32.totalorder %s138, %s140
      %p144 = scmp.eq.s32.totalorder %s20, 0
      %p145 = por %p143, %p144
      %p146 = scmp.ne.s32.totalorder %s138, %s140
      %p147 = scmp.eq.s32.totalorder %s25, 1
      %p148 = por %p146, %p147
      %p149 = scmp.ne.s32.totalorder %s140, %s141
      %p150 = scmp.eq.s32.totalorder %s25, 0
      %p151 = por %p149, %p150
      %p152 = scmp.ne.s32.totalorder %s140, %s141
      %p153 = scmp.eq.s32.totalorder %s26, 1
      %p154 = por %p152, %p153
      %p156 = scmp.ne.s32.totalorder %s141, %s155
      %p157 = scmp.eq.s32.totalorder %s26, 0
      %p158 = por %p156, %p157
      %s160 = sadd.s32 %s159, 1
      %p163 = scmp.eq.s32.totalorder %s20, 1
      %p164 = scmp.ne.s32.totalorder %s159, %s161
      %p165 = scmp.eq.s32.totalorder %s20, 0
      %p166 = por %p164, %p165
      %p167 = scmp.ne.s32.totalorder %s159, %s161
      %p168 = scmp.eq.s32.totalorder %s25, 1
      %p169 = por %p167, %p168
      %p170 = scmp.ne.s32.totalorder %s161, %s162
      %p171 = scmp.eq.s32.totalorder %s25, 0
      %p172 = por %p170, %p171
      %p173 = scmp.ne.s32.totalorder %s161, %s162
      %p174 = scmp.eq.s32.totalorder %s26, 1
      %p175 = por %p173, %p174
      %p177 = scmp.ne.s32.totalorder %s162, %s176
      %p178 = scmp.eq.s32.totalorder %s26, 0
      %p179 = por %p177, %p178
      %s181 = sadd.s32 %s180, 1
      %p184 = scmp.eq.s32.totalorder %s20, 1
      %p185 = scmp.ne.s32.totalorder %s180, %s182
      %p186 = scmp.eq.s32.totalorder %s20, 0
      %p187 = por %p185, %p186
      %p188 = scmp.ne.s32.totalorder %s180, %s182
      %p189 = scmp.eq.s32.totalorder %s25, 1
      %p190 = por %p188, %p189
      %p191 = scmp.ne.s32.totalorder %s182, %s183
      %p192 = scmp.eq.s32.totalorder %s25, 0
      %p193 = por %p191, %p192
      %p194 = scmp.ne.s32.totalorder %s182, %s183
      %p195 = scmp.eq.s32.totalorder %s26, 1
      %p196 = por %p194, %p195
      %p198 = scmp.ne.s32.totalorder %s183, %s197
      %p199 = scmp.eq.s32.totalorder %s26, 0
      %p200 = por %p198, %p199
      %s202 = sadd.s32 %s201, 1
      %p205 = scmp.eq.s32.totalorder %s20, 1
      %p206 = scmp.ne.s32.totalorder %s201, %s203
      %p207 = scmp.eq.s32.totalorder %s20, 0
      %p208 = por %p206, %p207
      %p209 = scmp.ne.s32.totalorder %s201, %s203
      %p210 = scmp.eq.s32.totalorder %s25, 1
      %p211 = por %p209, %p210
      %p212 = scmp.ne.s32.totalorder %s203, %s204
      %p213 = scmp.eq.s32.totalorder %s25, 0
      %p214 = por %p212, %p213
      %p215 = scmp.ne.s32.totalorder %s203, %s204
      %p216 = scmp.eq.s32.totalorder %s26, 1
      %p217 = por %p215, %p216
      %p219 = scmp.ne.s32.totalorder %s204, %s218
      %p220 = scmp.eq.s32.totalorder %s26, 0
      %p221 = por %p219, %p220
      %s223 = sadd.s32 %s222, 1
      %p226 = scmp.eq.s32.totalorder %s20, 1
      %p227 = scmp.ne.s32.totalorder %s222, %s224
      %p228 = scmp.eq.s32.totalorder %s20, 0
      %p229 = por %p227, %p228
      %p230 = scmp.ne.s32.totalorder %s222, %s224
      %p231 = scmp.eq.s32.totalorder %s25, 1
      %p232 = por %p230, %p231
      %p233 = scmp.ne.s32.totalorder %s224, %s225
      %p234 = scmp.eq.s32.totalorder %s25, 0
      %p235 = por %p233, %p234
      %p236 = scmp.ne.s32.totalorder %s224, %s225
      %p237 = scmp.eq.s32.totalorder %s26, 1
      %p238 = por %p236, %p237
      %p240 = scmp.ne.s32.totalorder %s225, %s239
      %p241 = scmp.eq.s32.totalorder %s26, 0
      %p242 = por %p240, %p241
      %s244 = sadd.s32 %s243, 1
      %p247 = scmp.eq.s32.totalorder %s20, 1
      %p248 = scmp.ne.s32.totalorder %s243, %s245
      %p249 = scmp.eq.s32.totalorder %s20, 0
      %p250 = por %p248, %p249
      %p251 = scmp.ne.s32.totalorder %s243, %s245
      %p252 = scmp.eq.s32.totalorder %s25, 1
      %p253 = por %p251, %p252
      %p254 = scmp.ne.s32.totalorder %s245, %s246
      %p255 = scmp.eq.s32.totalorder %s25, 0
      %p256 = por %p254, %p255
      %p257 = scmp.ne.s32.totalorder %s245, %s246
      %p258 = scmp.eq.s32.totalorder %s26, 1
      %p259 = por %p257, %p258
      %p261 = scmp.ne.s32.totalorder %s246, %s260
      %p262 = scmp.eq.s32.totalorder %s26, 0
      %p263 = por %p261, %p262
      %s264 = ssub.s32 %s20, %s27
      %p265 = scmp.eq.s32.totalorder %s264, 0
      %s267 = sadd.s32 %s266, 1
      %s268 = scalar_select %p265, %s266, %s267
      %p271 = pneg %p265
      %p272 = scmp.eq.s32.totalorder %s20, 1
      %p273 = por %p271, %p272
      %p274 = scmp.ne.s32.totalorder %s266, %s269
      %p275 = scmp.eq.s32.totalorder %s20, 0
      %p276 = por %p274, %p275
      %p277 = scmp.ne.s32.totalorder %s266, %s269
      %p278 = scmp.eq.s32.totalorder %s25, 1
      %p279 = por %p277, %p278
      %p280 = scmp.ne.s32.totalorder %s269, %s270
      %p281 = scmp.eq.s32.totalorder %s25, 0
      %p282 = por %p280, %p281
      %p283 = scmp.ne.s32.totalorder %s269, %s270
      %p284 = scmp.eq.s32.totalorder %s26, 1
      %p285 = por %p283, %p284
      %p287 = scmp.ne.s32.totalorder %s270, %s286
      %p288 = scmp.eq.s32.totalorder %s26, 0
      %p289 = por %p287, %p288
      %p290 = scmp.le.s32.totalorder 1, %s20
      %p291 = scmp.lt.s32.totalorder %s20, 3
      %p292 = pnand %p290, %p291
      %p293 = pneg %p292
      // Predicated region
      $region9: #{tpu_custom_call.1} parent=5 // pred_check
        _
      $region10: #{tpu_custom_call.1} parent=5 // pred_check_branch
        %295 = sbr.rel (%p292) target = $region12
      $region11: #{tpu_custom_call.1} parent=5 // pred_region
        %s296 = ssub.s32 %s20, 1
        // Predicated region
        $region13: #{tpu_custom_call.1} parent=11 // pred_check
          %p297 = pneg %p67
        $region14: #{tpu_custom_call.1} parent=11 // pred_check_branch
          %299 = sbr.rel (%p297) target = $region16
        $region15: #{tpu_custom_call.1} parent=11 // pred_region
          _
        $region16: #{tpu_custom_call.1} parent=11 // pred_fallthru
          _
        // Predicated region
        $region17: #{tpu_custom_call.1} parent=11 // pred_check
          %p300 = pneg %p88
        $region18: #{tpu_custom_call.1} parent=11 // pred_check_branch
          %302 = sbr.rel (%p300) target = $region20
        $region19: #{tpu_custom_call.1} parent=11 // pred_region
          _
        $region20: #{tpu_custom_call.1} parent=11 // pred_fallthru
          _
        // Predicated region
        $region21: #{tpu_custom_call.1} parent=11 // pred_check
          %p303 = pneg %p109
        $region22: #{tpu_custom_call.1} parent=11 // pred_check_branch
          %305 = sbr.rel (%p303) target = $region24
        $region23: #{tpu_custom_call.1} parent=11 // pred_region
          _
        $region24: #{tpu_custom_call.1} parent=11 // pred_fallthru
          _
        // Predicated region
        $region25: #{tpu_custom_call.1} parent=11 // pred_check
          %p306 = pneg %p130
        $region26: #{tpu_custom_call.1} parent=11 // pred_check_branch
          %308 = sbr.rel (%p306) target = $region28
        $region27: #{tpu_custom_call.1} parent=11 // pred_region
          _
        $region28: #{tpu_custom_call.1} parent=11 // pred_fallthru
          _
        // Predicated region
        $region29: #{tpu_custom_call.1} parent=11 // pred_check
          %p309 = pneg %p151
        $region30: #{tpu_custom_call.1} parent=11 // pred_check_branch
          %311 = sbr.rel (%p309) target = $region32
        $region31: #{tpu_custom_call.1} parent=11 // pred_region
          _
        $region32: #{tpu_custom_call.1} parent=11 // pred_fallthru
          _
        // Predicated region
        $region33: #{tpu_custom_call.1} parent=11 // pred_check
          %p312 = pneg %p172
        $region34: #{tpu_custom_call.1} parent=11 // pred_check_branch
          %314 = sbr.rel (%p312) target = $region36
        $region35: #{tpu_custom_call.1} parent=11 // pred_region
          _
        $region36: #{tpu_custom_call.1} parent=11 // pred_fallthru
          _
        // Predicated region
        $region37: #{tpu_custom_call.1} parent=11 // pred_check
          %p315 = pneg %p193
        $region38: #{tpu_custom_call.1} parent=11 // pred_check_branch
          %317 = sbr.rel (%p315) target = $region40
        $region39: #{tpu_custom_call.1} parent=11 // pred_region
          _
        $region40: #{tpu_custom_call.1} parent=11 // pred_fallthru
          _
        // Predicated region
        $region41: #{tpu_custom_call.1} parent=11 // pred_check
          %p318 = pneg %p214
        $region42: #{tpu_custom_call.1} parent=11 // pred_check_branch
          %320 = sbr.rel (%p318) target = $region44
        $region43: #{tpu_custom_call.1} parent=11 // pred_region
          _
        $region44: #{tpu_custom_call.1} parent=11 // pred_fallthru
          _
        // Predicated region
        $region45: #{tpu_custom_call.1} parent=11 // pred_check
          %p321 = pneg %p235
        $region46: #{tpu_custom_call.1} parent=11 // pred_check_branch
          %323 = sbr.rel (%p321) target = $region48
        $region47: #{tpu_custom_call.1} parent=11 // pred_region
          _
        $region48: #{tpu_custom_call.1} parent=11 // pred_fallthru
          _
        // Predicated region
        $region49: #{tpu_custom_call.1} parent=11 // pred_check
          %p324 = pneg %p256
        $region50: #{tpu_custom_call.1} parent=11 // pred_check_branch
          %326 = sbr.rel (%p324) target = $region52
        $region51: #{tpu_custom_call.1} parent=11 // pred_region
          _
        $region52: #{tpu_custom_call.1} parent=11 // pred_fallthru
          _
      $region12: #{tpu_custom_call.1} parent=5 // pred_fallthru
        _
      %p327 = scmp.lt.s32.totalorder %s20, 2
      // Predicated region
      $region53: #{tpu_custom_call.1} parent=5 // pred_check
        %p328 = pneg %p327
      $region54: #{tpu_custom_call.1} parent=5 // pred_check_branch
        %330 = sbr.rel (%p328) target = $region56
      $region55: #{tpu_custom_call.1} parent=5 // pred_region
        // Predicated region
        $region57: #{tpu_custom_call.1} parent=55 // pred_check
          %p331 = pneg %p40
        $region58: #{tpu_custom_call.1} parent=55 // pred_check_branch
          %333 = sbr.rel (%p331) target = $region60
        $region59: #{tpu_custom_call.1} parent=55 // pred_region
          %p334 = scmp.lt.s32.totalorder %s20, 1
          %s335 = scalar_select %p334, %s20, 1
          %s336 = smul.addr %s335, 2
          %s337 = smul.addr %s336, 8
          %s338 = scalar_lea.vmem %s0, %s337
        $region60: #{tpu_custom_call.1} parent=55 // pred_fallthru
          _
      $region56: #{tpu_custom_call.1} parent=5 // pred_fallthru
        _
      %p339 = scmp.le.s32.totalorder 1, %s20
      %p340 = scmp.lt.s32.totalorder %s20, 3
      %p341 = pnand %p339, %p340
      %p342 = pneg %p341
      // Predicated region
      $region61: #{tpu_custom_call.1} parent=5 // pred_check
        _
      $region62: #{tpu_custom_call.1} parent=5 // pred_check_branch
        %344 = sbr.rel (%p341) target = $region64
      $region63: #{tpu_custom_call.1} parent=5 // pred_region
        %s345 = ssub.s32 %s20, 1
        %p346 = scmp.lt.s32.totalorder %s25, 1
        %s347 = scalar_select %p346, %s25, 1
        %s348 = smul.addr %s347, 2
        %s349 = smul.addr %s348, 8
        %s350 = scalar_lea.vmem %s0, %s349
        %p351 = pneg %p46
        %p352 = pneg %p43
        %p353 = pneg %p67
        %p354 = pneg %p64
        %p355 = pneg %p88
        %p356 = pneg %p85
        %p357 = pneg %p109
        %p358 = pneg %p106
        %p359 = pneg %p130
        %p360 = pneg %p127
        %p361 = pneg %p151
        %p362 = pneg %p148
        %p363 = pneg %p172
        %p364 = pneg %p169
        %p365 = pneg %p193
        %p366 = pneg %p190
        %p367 = pneg %p214
        %p368 = pneg %p211
        %p369 = pneg %p235
        %p370 = pneg %p232
        %p371 = pneg %p256
        %p372 = pneg %p253
        %p373 = pneg %p282
        %p374 = pneg %p279
        %s375 = sand.u32 %s269, 1
        %s376 = scalar_lea.sflag [#allocation6], %s375
        %s377 = sand.u32 %s269, 1
        %s378 = smul.addr %s377, 96
        %s379 = scalar_lea.vmem [#allocation5], %s378
        %p380 = scmp.lt.s32.totalorder %s25, 1
        %s381 = scalar_select %p380, %s25, 1
        %s382 = smul.addr %s381, 2
        %s383 = smul.addr %s382, 8
        %s384 = scalar_lea.vmem %s0, %s383
        %v385 = vld [vmem:[%s384] sm:$0xff]
        %v386 = vld [vmem:[%s384 + $0x8] sm:$0xff]
        %v387 = vld [vmem:[%s1] sm:$0xff]
        %v388 = vld [vmem:[%s1 + $0x8] sm:$0xff]
        %v389 = vld [vmem:[%s1 + $0x10] sm:$0xff]
        %v390 = vld [vmem:[%s1 + $0x18] sm:$0xff]
        %v391 = vld [vmem:[%s1 + $0x20] sm:$0xff]
        %v392 = vld [vmem:[%s1 + $0x28] sm:$0xff]
        %v393 = vld [vmem:[%s1 + $0x30] sm:$0xff]
        %v394 = vld [vmem:[%s1 + $0x38] sm:$0xff]
        %v395 = vld [vmem:[%s1 + $0x40] sm:$0xff]
        %v396 = vld [vmem:[%s1 + $0x48] sm:$0xff]
        %v397 = vld [vmem:[%s1 + $0x50] sm:$0xff]
        %v398 = vld [vmem:[%s1 + $0x58] sm:$0xff]
        %v399 = vld [vmem:[%s1 + $0x60] sm:$0xff]
        %v400 = vld [vmem:[%s1 + $0x68] sm:$0xff]
        %v401 = vld [vmem:[%s1 + $0x70] sm:$0xff]
        %v402 = vld [vmem:[%s1 + $0x78] sm:$0xff]
        %v403 = vld [vmem:[%s1 + $0x80] sm:$0xff]
        %v404 = vld [vmem:[%s1 + $0x88] sm:$0xff]
        %v405 = vld [vmem:[%s1 + $0x90] sm:$0xff]
        %v406 = vld [vmem:[%s1 + $0x98] sm:$0xff]
        %v407 = vld [vmem:[%s1 + $0xa0] sm:$0xff]
        %v408 = vld [vmem:[%s1 + $0xa8] sm:$0xff]
        %v409 = vld [vmem:[%s1 + $0xb0] sm:$0xff]
        %v410 = vld [vmem:[%s1 + $0xb8] sm:$0xff]
        %v411 = vld [vmem:[%s1 + $0xc0] sm:$0xff]
        %v412 = vld [vmem:[%s1 + $0xc8] sm:$0xff]
        %v413 = vld [vmem:[%s1 + $0xd0] sm:$0xff]
        %v414 = vld [vmem:[%s1 + $0xd8] sm:$0xff]
        %v415 = vld [vmem:[%s1 + $0xe0] sm:$0xff]
        %v416 = vld [vmem:[%s1 + $0xe8] sm:$0xff]
        %v417 = vld [vmem:[%s1 + $0xf0] sm:$0xff]
        %v418 = vld [vmem:[%s1 + $0xf8] sm:$0xff]
        %v419 = vld [vmem:[%s2] sm:$0xff]
        %420 = vmatprep.subr.mxu0 0.0
        %421 = vmatpush1.msra.mxu0 %v387
        %422 = vmatprep.subr.mxu0 0.0
        %423 = vmatpush1.msra.mxu0 %v388
        %424 = vmatprep.subr.mxu0 0.0
        %425 = vmatpush1.msra.mxu0 %v389
        %426 = vmatprep.subr.mxu0 0.0
        %427 = vmatpush1.msra.mxu0 %v390
        %428 = vmatprep.subr.mxu0 0.0
        %429 = vmatpush1.msra.mxu0 %v391
        %430 = vmatprep.subr.mxu0 0.0
        %431 = vmatpush1.msra.mxu0 %v392
        %432 = vmatprep.subr.mxu0 0.0
        %433 = vmatpush1.msra.mxu0 %v393
        %434 = vmatprep.subr.mxu0 0.0
        %435 = vmatpush1.msra.mxu0 %v394
        %436 = vmatprep.subr.mxu0 0.0
        %437 = vmatpush1.msra.mxu0 %v395
        %438 = vmatprep.subr.mxu0 0.0
        %439 = vmatpush1.msra.mxu0 %v396
        %440 = vmatprep.subr.mxu0 0.0
        %441 = vmatpush1.msra.mxu0 %v397
        %442 = vmatprep.subr.mxu0 0.0
        %443 = vmatpush1.msra.mxu0 %v398
        %444 = vmatprep.subr.mxu0 0.0
        %445 = vmatpush1.msra.mxu0 %v399
        %446 = vmatprep.subr.mxu0 0.0
        %447 = vmatpush1.msra.mxu0 %v400
        %448 = vmatprep.subr.mxu0 0.0
        %449 = vmatpush1.msra.mxu0 %v401
        %450 = vmatprep.subr.mxu0 0.0
        %451 = vmatpush1.msra.mxu0 %v402
        %452 = vmatprep.subr.mxu0 0.0
        %453 = vmatpush1.msra.mxu0 %v403
        %454 = vmatprep.subr.mxu0 0.0
        %455 = vmatpush1.msra.mxu0 %v404
        %456 = vmatprep.subr.mxu0 0.0
        %457 = vmatpush1.msra.mxu0 %v405
        %458 = vmatprep.subr.mxu0 0.0
        %459 = vmatpush1.msra.mxu0 %v406
        %460 = vmatprep.subr.mxu0 0.0
        %461 = vmatpush1.msra.mxu0 %v407
        %462 = vmatprep.subr.mxu0 0.0
        %463 = vmatpush1.msra.mxu0 %v408
        %464 = vmatprep.subr.mxu0 0.0
        %465 = vmatpush1.msra.mxu0 %v409
        %466 = vmatprep.subr.mxu0 0.0
        %467 = vmatpush1.msra.mxu0 %v410
        %468 = vmatprep.subr.mxu0 0.0
        %469 = vmatpush1.msra.mxu0 %v411
        %470 = vmatprep.subr.mxu0 0.0
        %471 = vmatpush1.msra.mxu0 %v412
        %472 = vmatprep.subr.mxu0 0.0
        %473 = vmatpush1.msra.mxu0 %v413
        %474 = vmatprep.subr.mxu0 0.0
        %475 = vmatpush1.msra.mxu0 %v414
        %476 = vmatprep.subr.mxu0 0.0
        %477 = vmatpush1.msra.mxu0 %v415
        %478 = vmatprep.subr.mxu0 0.0
        %479 = vmatpush1.msra.mxu0 %v416
        %480 = vmatprep.subr.mxu0 0.0
        %481 = vmatpush1.msra.mxu0 %v417
        %482 = vmatprep.subr.mxu0 0.0
        %483 = vmatpush1.msra.mxu0 %v418
        %484 = vmatprep.mubr.f32.mxu0 %v386
        %485 = vmatmul.mubr.f32.gmra.mrb[0].mxu0 %v385
        %v486 = vpop.f32.mrb[0].mxu0
        %v487 = vadd.f32 %v419, %v486
        %v488 = vpop.f32.mrb[0].mxu0
        %489 = vdwg.mxu0
        %v490 = vmax.f32 %v487, 0.0
        %v491 = vld [vmem:[%s3] sm:$0xff]
        %v492 = vld [vmem:[%s3 + $0x8] sm:$0xff]
        %v493 = vld [vmem:[%s3 + $0x10] sm:$0xff]
        %v494 = vld [vmem:[%s3 + $0x18] sm:$0xff]
        %v495 = vld [vmem:[%s3 + $0x20] sm:$0xff]
        %v496 = vld [vmem:[%s3 + $0x28] sm:$0xff]
        %v497 = vld [vmem:[%s3 + $0x30] sm:$0xff]
        %v498 = vld [vmem:[%s3 + $0x38] sm:$0xff]
        %v499 = vld [vmem:[%s3 + $0x40] sm:$0xff]
        %v500 = vld [vmem:[%s3 + $0x48] sm:$0xff]
        %v501 = vld [vmem:[%s3 + $0x50] sm:$0xff]
        %v502 = vld [vmem:[%s3 + $0x58] sm:$0xff]
        %v503 = vld [vmem:[%s3 + $0x60] sm:$0xff]
        %v504 = vld [vmem:[%s3 + $0x68] sm:$0xff]
        %v505 = vld [vmem:[%s3 + $0x70] sm:$0xff]
        %v506 = vld [vmem:[%s3 + $0x78] sm:$0xff]
        %v507 = vld [vmem:[%s3 + $0x80] sm:$0xff]
        %v508 = vld [vmem:[%s3 + $0x88] sm:$0xff]
        %v509 = vld [vmem:[%s3 + $0x90] sm:$0xff]
        %v510 = vld [vmem:[%s3 + $0x98] sm:$0xff]
        %v511 = vld [vmem:[%s3 + $0xa0] sm:$0xff]
        %v512 = vld [vmem:[%s3 + $0xa8] sm:$0xff]
        %v513 = vld [vmem:[%s3 + $0xb0] sm:$0xff]
        %v514 = vld [vmem:[%s3 + $0xb8] sm:$0xff]
        %v515 = vld [vmem:[%s3 + $0xc0] sm:$0xff]
        %v516 = vld [vmem:[%s3 + $0xc8] sm:$0xff]
        %v517 = vld [vmem:[%s3 + $0xd0] sm:$0xff]
        %v518 = vld [vmem:[%s3 + $0xd8] sm:$0xff]
        %v519 = vld [vmem:[%s3 + $0xe0] sm:$0xff]
        %v520 = vld [vmem:[%s3 + $0xe8] sm:$0xff]
        %v521 = vld [vmem:[%s3 + $0xf0] sm:$0xff]
        %v522 = vld [vmem:[%s3 + $0xf8] sm:$0xff]
        %v523 = vld [vmem:[%s3 + $0x100] sm:$0xff]
        %v524 = vld [vmem:[%s3 + $0x108] sm:$0xff]
        %v525 = vld [vmem:[%s3 + $0x110] sm:$0xff]
        %v526 = vld [vmem:[%s3 + $0x118] sm:$0xff]
        %v527 = vld [vmem:[%s3 + $0x120] sm:$0xff]
        %v528 = vld [vmem:[%s3 + $0x128] sm:$0xff]
        %v529 = vld [vmem:[%s3 + $0x130] sm:$0xff]
        %v530 = vld [vmem:[%s3 + $0x138] sm:$0xff]
        %v531 = vld [vmem:[%s3 + $0x140] sm:$0xff]
        %v532 = vld [vmem:[%s3 + $0x148] sm:$0xff]
        %v533 = vld [vmem:[%s3 + $0x150] sm:$0xff]
        %v534 = vld [vmem:[%s3 + $0x158] sm:$0xff]
        %v535 = vld [vmem:[%s3 + $0x160] sm:$0xff]
        %v536 = vld [vmem:[%s3 + $0x168] sm:$0xff]
        %v537 = vld [vmem:[%s3 + $0x170] sm:$0xff]
        %v538 = vld [vmem:[%s3 + $0x178] sm:$0xff]
        %v539 = vld [vmem:[%s3 + $0x180] sm:$0xff]
        %v540 = vld [vmem:[%s3 + $0x188] sm:$0xff]
        %v541 = vld [vmem:[%s3 + $0x190] sm:$0xff]
        %v542 = vld [vmem:[%s3 + $0x198] sm:$0xff]
        %v543 = vld [vmem:[%s3 + $0x1a0] sm:$0xff]
        %v544 = vld [vmem:[%s3 + $0x1a8] sm:$0xff]
        %v545 = vld [vmem:[%s3 + $0x1b0] sm:$0xff]
        %v546 = vld [vmem:[%s3 + $0x1b8] sm:$0xff]
        %v547 = vld [vmem:[%s3 + $0x1c0] sm:$0xff]
        %v548 = vld [vmem:[%s3 + $0x1c8] sm:$0xff]
        %v549 = vld [vmem:[%s3 + $0x1d0] sm:$0xff]
        %v550 = vld [vmem:[%s3 + $0x1d8] sm:$0xff]
        %v551 = vld [vmem:[%s3 + $0x1e0] sm:$0xff]
        %v552 = vld [vmem:[%s3 + $0x1e8] sm:$0xff]
        %v553 = vld [vmem:[%s3 + $0x1f0] sm:$0xff]
        %v554 = vld [vmem:[%s3 + $0x1f8] sm:$0xff]
        %555 = vmatprep.subr.mxu0 %v492
        %556 = vmatpush1.msra.mxu0 %v491
        %557 = vmatprep.subr.mxu0 %v496
        %558 = vmatpush1.msra.mxu0 %v495
        %559 = vmatprep.subr.mxu0 %v500
        %560 = vmatpush1.msra.mxu0 %v499
        %561 = vmatprep.subr.mxu0 %v504
        %562 = vmatpush1.msra.mxu0 %v503
        %563 = vmatprep.subr.mxu0 %v508
        %564 = vmatpush1.msra.mxu0 %v507
        %565 = vmatprep.subr.mxu0 %v512
        %566 = vmatpush1.msra.mxu0 %v511
        %567 = vmatprep.subr.mxu0 %v516
        %568 = vmatpush1.msra.mxu0 %v515
        %569 = vmatprep.subr.mxu0 %v520
        %570 = vmatpush1.msra.mxu0 %v519
        %571 = vmatprep.subr.mxu0 %v524
        %572 = vmatpush1.msra.mxu0 %v523
        %573 = vmatprep.subr.mxu0 %v528
        %574 = vmatpush1.msra.mxu0 %v527
        %575 = vmatprep.subr.mxu0 %v532
        %576 = vmatpush1.msra.mxu0 %v531
        %577 = vmatprep.subr.mxu0 %v536
        %578 = vmatpush1.msra.mxu0 %v535
        %579 = vmatprep.subr.mxu0 %v540
        %580 = vmatpush1.msra.mxu0 %v539
        %581 = vmatprep.subr.mxu0 %v544
        %582 = vmatpush1.msra.mxu0 %v543
        %583 = vmatprep.subr.mxu0 %v548
        %584 = vmatpush1.msra.mxu0 %v547
        %585 = vmatprep.subr.mxu0 %v552
        %586 = vmatpush1.msra.mxu0 %v551
        %587 = vmatprep.subr.mxu0 0.0
        %588 = vmatpush1.msra.mxu0 0.0
        %589 = vmatprep.subr.mxu0 0.0
        %590 = vmatpush1.msra.mxu0 0.0
        %591 = vmatprep.subr.mxu0 0.0
        %592 = vmatpush1.msra.mxu0 0.0
        %593 = vmatprep.subr.mxu0 0.0
        %594 = vmatpush1.msra.mxu0 0.0
        %595 = vmatprep.subr.mxu0 0.0
        %596 = vmatpush1.msra.mxu0 0.0
        %597 = vmatprep.subr.mxu0 0.0
        %598 = vmatpush1.msra.mxu0 0.0
        %599 = vmatprep.subr.mxu0 0.0
        %600 = vmatpush1.msra.mxu0 0.0
        %601 = vmatprep.subr.mxu0 0.0
        %602 = vmatpush1.msra.mxu0 0.0
        %603 = vmatprep.subr.mxu0 0.0
        %604 = vmatpush1.msra.mxu0 0.0
        %605 = vmatprep.subr.mxu0 0.0
        %606 = vmatpush1.msra.mxu0 0.0
        %607 = vmatprep.subr.mxu0 0.0
        %608 = vmatpush1.msra.mxu0 0.0
        %609 = vmatprep.subr.mxu0 0.0
        %610 = vmatpush1.msra.mxu0 0.0
        %611 = vmatprep.subr.mxu0 0.0
        %612 = vmatpush1.msra.mxu0 0.0
        %613 = vmatprep.subr.mxu0 0.0
        %614 = vmatpush1.msra.mxu0 0.0
        %615 = vmatprep.subr.mxu0 0.0
        %616 = vmatpush1.msra.mxu0 0.0
        %617 = vmatprep.subr.mxu0 0.0
        %618 = vmatpush1.msra.mxu0 0.0
        %619 = vmatprep.mubr.f32.mxu0 0.0
        %620 = vmatmul.mubr.f32.gmra.mrb[0].mxu0 %v490
        %v621 = vpop.f32.mrb[0].mxu0
        %v622 = vadd.f32 0.0, %v621
        %v623 = vpop.f32.mrb[0].mxu0
        %v624 = vadd.f32 0.0, %v623
        %625 = vdwg.mxu0
        %626 = vmatprep.subr.mxu0 %v494
        %627 = vmatpush1.msra.mxu0 %v493
        %628 = vmatprep.subr.mxu0 %v498
        %629 = vmatpush1.msra.mxu0 %v497
        %630 = vmatprep.subr.mxu0 %v502
        %631 = vmatpush1.msra.mxu0 %v501
        %632 = vmatprep.subr.mxu0 %v506
        %633 = vmatpush1.msra.mxu0 %v505
        %634 = vmatprep.subr.mxu0 %v510
        %635 = vmatpush1.msra.mxu0 %v509
        %636 = vmatprep.subr.mxu0 %v514
        %637 = vmatpush1.msra.mxu0 %v513
        %638 = vmatprep.subr.mxu0 %v518
        %639 = vmatpush1.msra.mxu0 %v517
        %640 = vmatprep.subr.mxu0 %v522
        %641 = vmatpush1.msra.mxu0 %v521
        %642 = vmatprep.subr.mxu0 %v526
        %643 = vmatpush1.msra.mxu0 %v525
        %644 = vmatprep.subr.mxu0 %v530
        %645 = vmatpush1.msra.mxu0 %v529
        %646 = vmatprep.subr.mxu0 %v534
        %647 = vmatpush1.msra.mxu0 %v533
        %648 = vmatprep.subr.mxu0 %v538
        %649 = vmatpush1.msra.mxu0 %v537
        %650 = vmatprep.subr.mxu0 %v542
        %651 = vmatpush1.msra.mxu0 %v541
        %652 = vmatprep.subr.mxu0 %v546
        %653 = vmatpush1.msra.mxu0 %v545
        %654 = vmatprep.subr.mxu0 %v550
        %655 = vmatpush1.msra.mxu0 %v549
        %656 = vmatprep.subr.mxu0 %v554
        %657 = vmatpush1.msra.mxu0 %v553
        %658 = vmatprep.subr.mxu0 0.0
        %659 = vmatpush1.msra.mxu0 0.0
        %660 = vmatprep.subr.mxu0 0.0
        %661 = vmatpush1.msra.mxu0 0.0
        %662 = vmatprep.subr.mxu0 0.0
        %663 = vmatpush1.msra.mxu0 0.0
        %664 = vmatprep.subr.mxu0 0.0
        %665 = vmatpush1.msra.mxu0 0.0
        %666 = vmatprep.subr.mxu0 0.0
        %667 = vmatpush1.msra.mxu0 0.0
        %668 = vmatprep.subr.mxu0 0.0
        %669 = vmatpush1.msra.mxu0 0.0
        %670 = vmatprep.subr.mxu0 0.0
        %671 = vmatpush1.msra.mxu0 0.0
        %672 = vmatprep.subr.mxu0 0.0
        %673 = vmatpush1.msra.mxu0 0.0
        %674 = vmatprep.subr.mxu0 0.0
        %675 = vmatpush1.msra.mxu0 0.0
        %676 = vmatprep.subr.mxu0 0.0
        %677 = vmatpush1.msra.mxu0 0.0
        %678 = vmatprep.subr.mxu0 0.0
        %679 = vmatpush1.msra.mxu0 0.0
        %680 = vmatprep.subr.mxu0 0.0
        %681 = vmatpush1.msra.mxu0 0.0
        %682 = vmatprep.subr.mxu0 0.0
        %683 = vmatpush1.msra.mxu0 0.0
        %684 = vmatprep.subr.mxu0 0.0
        %685 = vmatpush1.msra.mxu0 0.0
        %686 = vmatprep.subr.mxu0 0.0
        %687 = vmatpush1.msra.mxu0 0.0
        %688 = vmatprep.subr.mxu0 0.0
        %689 = vmatpush1.msra.mxu0 0.0
        %690 = vmatprep.mubr.f32.mxu0 0.0
        %691 = vmatmul.mubr.f32.gmra.mrb[0].mxu0 %v490
        %v692 = vpop.f32.mrb[0].mxu0
        %v693 = vadd.f32 0.0, %v692
        %v694 = vpop.f32.mrb[0].mxu0
        %v695 = vadd.f32 0.0, %v694
        %696 = vdwg.mxu0
        %697 = vst [vmem:[#allocation2] sm:$0xff] %v622
        %698 = vst [vmem:[#allocation2 + $0x8] sm:$0xff] %v624
        %699 = vst [vmem:[#allocation2 + $0x10] sm:$0xff] %v693
        %700 = vst [vmem:[#allocation2 + $0x18] sm:$0xff] %v695
        %v701 = vld [vmem:[%s4] sm:$0xff]
        %v702 = vld [vmem:[%s4 + $0x8] sm:$0xff]
        %v703 = vld [vmem:[#allocation2] sm:$0xff]
        %v704 = vld [vmem:[#allocation2 + $0x8] sm:$0xff]
        %v705 = vld [vmem:[#allocation2 + $0x10] sm:$0xff]
        %v706 = vld [vmem:[#allocation2 + $0x18] sm:$0xff]
        %v707 = vld [vmem:[%s5] sm:$0x1]
        %v709 = vlaneseq
        %v710 = vshrl.u32 %v709, 7
        %v711 = vsub.s32 0, %v710
        %v712 = vrot.slane %v707, %v711
        %vm714 = vcmask 261120
        %v716 = vsel %vm714, %v701, 0
        %v719 = vsel %vm714, %v702, 0
        %721 = vmatprep.subr.mxu0 0.0
        %722 = vmatpush1.msra.mxu0 %v703
        %723 = vmatprep.subr.mxu0 0.0
        %724 = vmatpush1.msra.mxu0 %v704
        %725 = vmatprep.subr.mxu0 0.0
        %726 = vmatpush1.msra.mxu0 %v705
        %727 = vmatprep.subr.mxu0 0.0
        %728 = vmatpush1.msra.mxu0 %v706
        %729 = vmatprep.subr.mxu0 0.0
        %730 = vmatpush1.msra.mxu0 0.0
        %731 = vmatprep.subr.mxu0 0.0
        %732 = vmatpush1.msra.mxu0 0.0
        %733 = vmatprep.subr.mxu0 0.0
        %734 = vmatpush1.msra.mxu0 0.0
        %735 = vmatprep.subr.mxu0 0.0
        %736 = vmatpush1.msra.mxu0 0.0
        %737 = vmatprep.subr.mxu0 0.0
        %738 = vmatpush1.msra.mxu0 0.0
        %739 = vmatprep.subr.mxu0 0.0
        %740 = vmatpush1.msra.mxu0 0.0
        %741 = vmatprep.subr.mxu0 0.0
        %742 = vmatpush1.msra.mxu0 0.0
        %743 = vmatprep.subr.mxu0 0.0
        %744 = vmatpush1.msra.mxu0 0.0
        %745 = vmatprep.subr.mxu0 0.0
        %746 = vmatpush1.msra.mxu0 0.0
        %747 = vmatprep.subr.mxu0 0.0
        %748 = vmatpush1.msra.mxu0 0.0
        %749 = vmatprep.subr.mxu0 0.0
        %750 = vmatpush1.msra.mxu0 0.0
        %751 = vmatprep.subr.mxu0 0.0
        %752 = vmatpush1.msra.mxu0 0.0
        %753 = vmatprep.subr.mxu0 0.0
        %754 = vmatpush1.msra.mxu0 0.0
        %755 = vmatprep.subr.mxu0 0.0
        %756 = vmatpush1.msra.mxu0 0.0
        %757 = vmatprep.subr.mxu0 0.0
        %758 = vmatpush1.msra.mxu0 0.0
        %759 = vmatprep.subr.mxu0 0.0
        %760 = vmatpush1.msra.mxu0 0.0
        %761 = vmatprep.subr.mxu0 0.0
        %762 = vmatpush1.msra.mxu0 0.0
        %763 = vmatprep.subr.mxu0 0.0
        %764 = vmatpush1.msra.mxu0 0.0
        %765 = vmatprep.subr.mxu0 0.0
        %766 = vmatpush1.msra.mxu0 0.0
        %767 = vmatprep.subr.mxu0 0.0
        %768 = vmatpush1.msra.mxu0 0.0
        %769 = vmatprep.subr.mxu0 0.0
        %770 = vmatpush1.msra.mxu0 0.0
        %771 = vmatprep.subr.mxu0 0.0
        %772 = vmatpush1.msra.mxu0 0.0
        %773 = vmatprep.subr.mxu0 0.0
        %774 = vmatpush1.msra.mxu0 0.0
        %775 = vmatprep.subr.mxu0 0.0
        %776 = vmatpush1.msra.mxu0 0.0
        %777 = vmatprep.subr.mxu0 0.0
        %778 = vmatpush1.msra.mxu0 0.0
        %779 = vmatprep.subr.mxu0 0.0
        %780 = vmatpush1.msra.mxu0 0.0
        %781 = vmatprep.subr.mxu0 0.0
        %782 = vmatpush1.msra.mxu0 0.0
        %783 = vmatprep.subr.mxu0 0.0
        %784 = vmatpush1.msra.mxu0 0.0
        %785 = vmatprep.mubr.f32.mxu0 0.0
        %786 = vmatmul.mubr.f32.gmra.mrb[0].mxu0 %v716
        %v787 = vpop.f32.mrb[0].mxu0
        %v788 = vadd.f32 %v712, %v787
        %v789 = vpop.f32.mrb[0].mxu0
        %790 = vmatprep.mubr.f32.mxu0 0.0
        %791 = vmatmul.mubr.f32.gmra.mrb[0].mxu0 %v719
        %v792 = vpop.f32.mrb[0].mxu0
        %v793 = vadd.f32 %v712, %v792
        %v794 = vpop.f32.mrb[0].mxu0
        %795 = vdwg.mxu0
        %v796 = vmax.f32 %v788, 0.0
        %v797 = vmax.f32 %v793, 0.0
        %v798 = vld [vmem:[%s6] sm:$0xff]
        %v799 = vld [vmem:[%s6 + $0x8] sm:$0xff]
        %v800 = vld [vmem:[%s6 + $0x10] sm:$0xff]
        %v801 = vld [vmem:[%s6 + $0x18] sm:$0xff]
        %v802 = vld [vmem:[%s6 + $0x20] sm:$0xff]
        %v803 = vld [vmem:[%s6 + $0x28] sm:$0xff]
        %v804 = vld [vmem:[%s6 + $0x30] sm:$0xff]
        %v805 = vld [vmem:[%s6 + $0x38] sm:$0xff]
        %v806 = vld [vmem:[%s6 + $0x40] sm:$0xff]
        %v807 = vld [vmem:[%s6 + $0x48] sm:$0xff]
        %v808 = vld [vmem:[%s6 + $0x50] sm:$0xff]
        %v809 = vld [vmem:[%s6 + $0x58] sm:$0xff]
        %v810 = vld [vmem:[%s6 + $0x60] sm:$0xff]
        %v811 = vld [vmem:[%s6 + $0x68] sm:$0xff]
        %v812 = vld [vmem:[%s6 + $0x70] sm:$0xff]
        %v813 = vld [vmem:[%s6 + $0x78] sm:$0xff]
        %v814 = vld [vmem:[%s6 + $0x80] sm:$0xff]
        %v815 = vld [vmem:[%s6 + $0x88] sm:$0xff]
        %v816 = vld [vmem:[%s6 + $0x90] sm:$0xff]
        %v817 = vld [vmem:[%s6 + $0x98] sm:$0xff]
        %v818 = vld [vmem:[%s6 + $0xa0] sm:$0xff]
        %v819 = vld [vmem:[%s6 + $0xa8] sm:$0xff]
        %v820 = vld [vmem:[%s6 + $0xb0] sm:$0xff]
        %v821 = vld [vmem:[%s6 + $0xb8] sm:$0xff]
        %v822 = vld [vmem:[%s6 + $0xc0] sm:$0xff]
        %v823 = vld [vmem:[%s6 + $0xc8] sm:$0xff]
        %v824 = vld [vmem:[%s6 + $0xd0] sm:$0xff]
        %v825 = vld [vmem:[%s6 + $0xd8] sm:$0xff]
        %v826 = vld [vmem:[%s6 + $0xe0] sm:$0xff]
        %v827 = vld [vmem:[%s6 + $0xe8] sm:$0xff]
        %v828 = vld [vmem:[%s6 + $0xf0] sm:$0xff]
        %v829 = vld [vmem:[%s6 + $0xf8] sm:$0xff]
        %v830 = vld [vmem:[%s6 + $0x100] sm:$0xff]
        %v831 = vld [vmem:[%s6 + $0x108] sm:$0xff]
        %v832 = vld [vmem:[%s6 + $0x110] sm:$0xff]
        %v833 = vld [vmem:[%s6 + $0x118] sm:$0xff]
        %v834 = vld [vmem:[%s6 + $0x120] sm:$0xff]
        %v835 = vld [vmem:[%s6 + $0x128] sm:$0xff]
        %v836 = vld [vmem:[%s6 + $0x130] sm:$0xff]
        %v837 = vld [vmem:[%s6 + $0x138] sm:$0xff]
        %v838 = vld [vmem:[%s6 + $0x140] sm:$0xff]
        %v839 = vld [vmem:[%s6 + $0x148] sm:$0xff]
        %v840 = vld [vmem:[%s6 + $0x150] sm:$0xff]
        %v841 = vld [vmem:[%s6 + $0x158] sm:$0xff]
        %v842 = vld [vmem:[%s6 + $0x160] sm:$0xff]
        %v843 = vld [vmem:[%s6 + $0x168] sm:$0xff]
        %v844 = vld [vmem:[%s6 + $0x170] sm:$0xff]
        %v845 = vld [vmem:[%s6 + $0x178] sm:$0xff]
        %v846 = vld [vmem:[%s6 + $0x180] sm:$0xff]
        %v847 = vld [vmem:[%s6 + $0x188] sm:$0xff]
        %v848 = vld [vmem:[%s6 + $0x190] sm:$0xff]
        %v849 = vld [vmem:[%s6 + $0x198] sm:$0xff]
        %v850 = vld [vmem:[%s6 + $0x1a0] sm:$0xff]
        %v851 = vld [vmem:[%s6 + $0x1a8] sm:$0xff]
        %v852 = vld [vmem:[%s6 + $0x1b0] sm:$0xff]
        %v853 = vld [vmem:[%s6 + $0x1b8] sm:$0xff]
        %v854 = vld [vmem:[%s6 + $0x1c0] sm:$0xff]
        %v855 = vld [vmem:[%s6 + $0x1c8] sm:$0xff]
        %v856 = vld [vmem:[%s6 + $0x1d0] sm:$0xff]
        %v857 = vld [vmem:[%s6 + $0x1d8] sm:$0xff]
        %v858 = vld [vmem:[%s6 + $0x1e0] sm:$0xff]
        %v859 = vld [vmem:[%s6 + $0x1e8] sm:$0xff]
        %v860 = vld [vmem:[%s6 + $0x1f0] sm:$0xff]
        %v861 = vld [vmem:[%s6 + $0x1f8] sm:$0xff]
        %862 = vmatprep.subr.mxu0 %v799
        %863 = vmatpush1.msra.mxu0 %v798
        %864 = vmatprep.subr.mxu0 %v803
        %865 = vmatpush1.msra.mxu0 %v802
        %866 = vmatprep.subr.mxu0 %v807
        %867 = vmatpush1.msra.mxu0 %v806
        %868 = vmatprep.subr.mxu0 %v811
        %869 = vmatpush1.msra.mxu0 %v810
        %870 = vmatprep.subr.mxu0 %v815
        %871 = vmatpush1.msra.mxu0 %v814
        %872 = vmatprep.subr.mxu0 %v819
        %873 = vmatpush1.msra.mxu0 %v818
        %874 = vmatprep.subr.mxu0 %v823
        %875 = vmatpush1.msra.mxu0 %v822
        %876 = vmatprep.subr.mxu0 %v827
        %877 = vmatpush1.msra.mxu0 %v826
        %878 = vmatprep.subr.mxu0 %v831
        %879 = vmatpush1.msra.mxu0 %v830
        %880 = vmatprep.subr.mxu0 %v835
        %881 = vmatpush1.msra.mxu0 %v834
        %882 = vmatprep.subr.mxu0 %v839
        %883 = vmatpush1.msra.mxu0 %v838
        %884 = vmatprep.subr.mxu0 %v843
        %885 = vmatpush1.msra.mxu0 %v842
        %886 = vmatprep.subr.mxu0 %v847
        %887 = vmatpush1.msra.mxu0 %v846
        %888 = vmatprep.subr.mxu0 %v851
        %889 = vmatpush1.msra.mxu0 %v850
        %890 = vmatprep.subr.mxu0 %v855
        %891 = vmatpush1.msra.mxu0 %v854
        %892 = vmatprep.subr.mxu0 %v859
        %893 = vmatpush1.msra.mxu0 %v858
        %894 = vmatprep.subr.mxu0 0.0
        %895 = vmatpush1.msra.mxu0 0.0
        %896 = vmatprep.subr.mxu0 0.0
        %897 = vmatpush1.msra.mxu0 0.0
        %898 = vmatprep.subr.mxu0 0.0
        %899 = vmatpush1.msra.mxu0 0.0
        %900 = vmatprep.subr.mxu0 0.0
        %901 = vmatpush1.msra.mxu0 0.0
        %902 = vmatprep.subr.mxu0 0.0
        %903 = vmatpush1.msra.mxu0 0.0
        %904 = vmatprep.subr.mxu0 0.0
        %905 = vmatpush1.msra.mxu0 0.0
        %906 = vmatprep.subr.mxu0 0.0
        %907 = vmatpush1.msra.mxu0 0.0
        %908 = vmatprep.subr.mxu0 0.0
        %909 = vmatpush1.msra.mxu0 0.0
        %910 = vmatprep.subr.mxu0 0.0
        %911 = vmatpush1.msra.mxu0 0.0
        %912 = vmatprep.subr.mxu0 0.0
        %913 = vmatpush1.msra.mxu0 0.0
        %914 = vmatprep.subr.mxu0 0.0
        %915 = vmatpush1.msra.mxu0 0.0
        %916 = vmatprep.subr.mxu0 0.0
        %917 = vmatpush1.msra.mxu0 0.0
        %918 = vmatprep.subr.mxu0 0.0
        %919 = vmatpush1.msra.mxu0 0.0
        %920 = vmatprep.subr.mxu0 0.0
        %921 = vmatpush1.msra.mxu0 0.0
        %922 = vmatprep.subr.mxu0 0.0
        %923 = vmatpush1.msra.mxu0 0.0
        %924 = vmatprep.subr.mxu0 0.0
        %925 = vmatpush1.msra.mxu0 0.0
        %926 = vmatprep.mubr.f32.mxu0 0.0
        %927 = vmatmul.mubr.f32.gmra.mrb[0].mxu0 %v796
        %v928 = vpop.f32.mrb[0].mxu0
        %v929 = vadd.f32 0.0, %v928
        %v930 = vpop.f32.mrb[0].mxu0
        %v931 = vadd.f32 0.0, %v930
        %932 = vmatprep.mubr.f32.mxu0 0.0
        %933 = vmatmul.mubr.f32.gmra.mrb[0].mxu0 %v797
        %v934 = vpop.f32.mrb[0].mxu0
        %v935 = vadd.f32 0.0, %v934
        %v936 = vpop.f32.mrb[0].mxu0
        %v937 = vadd.f32 0.0, %v936
        %938 = vdwg.mxu0
        %939 = vmatprep.subr.mxu0 %v801
        %940 = vmatpush1.msra.mxu0 %v800
        %941 = vmatprep.subr.mxu0 %v805
        %942 = vmatpush1.msra.mxu0 %v804
        %943 = vmatprep.subr.mxu0 %v809
        %944 = vmatpush1.msra.mxu0 %v808
        %945 = vmatprep.subr.mxu0 %v813
        %946 = vmatpush1.msra.mxu0 %v812
        %947 = vmatprep.subr.mxu0 %v817
        %948 = vmatpush1.msra.mxu0 %v816
        %949 = vmatprep.subr.mxu0 %v821
        %950 = vmatpush1.msra.mxu0 %v820
        %951 = vmatprep.subr.mxu0 %v825
        %952 = vmatpush1.msra.mxu0 %v824
        %953 = vmatprep.subr.mxu0 %v829
        %954 = vmatpush1.msra.mxu0 %v828
        %955 = vmatprep.subr.mxu0 %v833
        %956 = vmatpush1.msra.mxu0 %v832
        %957 = vmatprep.subr.mxu0 %v837
        %958 = vmatpush1.msra.mxu0 %v836
        %959 = vmatprep.subr.mxu0 %v841
        %960 = vmatpush1.msra.mxu0 %v840
        %961 = vmatprep.subr.mxu0 %v845
        %962 = vmatpush1.msra.mxu0 %v844
        %963 = vmatprep.subr.mxu0 %v849
        %964 = vmatpush1.msra.mxu0 %v848
        %965 = vmatprep.subr.mxu0 %v853
        %966 = vmatpush1.msra.mxu0 %v852
        %967 = vmatprep.subr.mxu0 %v857
        %968 = vmatpush1.msra.mxu0 %v856
        %969 = vmatprep.subr.mxu0 %v861
        %970 = vmatpush1.msra.mxu0 %v860
        %971 = vmatprep.subr.mxu0 0.0
        %972 = vmatpush1.msra.mxu0 0.0
        %973 = vmatprep.subr.mxu0 0.0
        %974 = vmatpush1.msra.mxu0 0.0
        %975 = vmatprep.subr.mxu0 0.0
        %976 = vmatpush1.msra.mxu0 0.0
        %977 = vmatprep.subr.mxu0 0.0
        %978 = vmatpush1.msra.mxu0 0.0
        %979 = vmatprep.subr.mxu0 0.0
        %980 = vmatpush1.msra.mxu0 0.0
        %981 = vmatprep.subr.mxu0 0.0
        %982 = vmatpush1.msra.mxu0 0.0
        %983 = vmatprep.subr.mxu0 0.0
        %984 = vmatpush1.msra.mxu0 0.0
        %985 = vmatprep.subr.mxu0 0.0
        %986 = vmatpush1.msra.mxu0 0.0
        %987 = vmatprep.subr.mxu0 0.0
        %988 = vmatpush1.msra.mxu0 0.0
        %989 = vmatprep.subr.mxu0 0.0
        %990 = vmatpush1.msra.mxu0 0.0
        %991 = vmatprep.subr.mxu0 0.0
        %992 = vmatpush1.msra.mxu0 0.0
        %993 = vmatprep.subr.mxu0 0.0
        %994 = vmatpush1.msra.mxu0 0.0
        %995 = vmatprep.subr.mxu0 0.0
        %996 = vmatpush1.msra.mxu0 0.0
        %997 = vmatprep.subr.mxu0 0.0
        %998 = vmatpush1.msra.mxu0 0.0
        %999 = vmatprep.subr.mxu0 0.0
        %1000 = vmatpush1.msra.mxu0 0.0
        %1001 = vmatprep.subr.mxu0 0.0
        %1002 = vmatpush1.msra.mxu0 0.0
        %1003 = vmatprep.mubr.f32.mxu0 0.0
        %1004 = vmatmul.mubr.f32.gmra.mrb[0].mxu0 %v796
        %v1005 = vpop.f32.mrb[0].mxu0
        %v1006 = vadd.f32 0.0, %v1005
        %v1007 = vpop.f32.mrb[0].mxu0
        %v1008 = vadd.f32 0.0, %v1007
        %1009 = vmatprep.mubr.f32.mxu0 0.0
        %1010 = vmatmul.mubr.f32.gmra.mrb[0].mxu0 %v797
        %v1011 = vpop.f32.mrb[0].mxu0
        %v1012 = vadd.f32 0.0, %v1011
        %v1013 = vpop.f32.mrb[0].mxu0
        %v1014 = vadd.f32 0.0, %v1013
        %1015 = vdwg.mxu0
        %1016 = vst [vmem:[#allocation3] sm:$0xff] %v929
        %1017 = vst [vmem:[#allocation3 + $0x8] sm:$0xff] %v935
        %1018 = vst [vmem:[#allocation3 + $0x10] sm:$0xff] %v931
        %1019 = vst [vmem:[#allocation3 + $0x18] sm:$0xff] %v937
        %1020 = vst [vmem:[#allocation3 + $0x20] sm:$0xff] %v1006
        %1021 = vst [vmem:[#allocation3 + $0x28] sm:$0xff] %v1012
        %1022 = vst [vmem:[#allocation3 + $0x30] sm:$0xff] %v1008
        %1023 = vst [vmem:[#allocation3 + $0x38] sm:$0xff] %v1014
        %v1024 = vld [vmem:[%s7] sm:$0xff]
        %v1025 = vld [vmem:[%s7 + $0x8] sm:$0xff]
        %v1026 = vld [vmem:[%s7 + $0x10] sm:$0xff]
        %v1027 = vld [vmem:[%s7 + $0x18] sm:$0xff]
        %v1028 = vld [vmem:[#allocation3] sm:$0xff]
        %v1029 = vld [vmem:[#allocation3 + $0x8] sm:$0xff]
        %v1030 = vld [vmem:[#allocation3 + $0x10] sm:$0xff]
        %v1031 = vld [vmem:[#allocation3 + $0x18] sm:$0xff]
        %v1032 = vld [vmem:[#allocation3 + $0x20] sm:$0xff]
        %v1033 = vld [vmem:[#allocation3 + $0x28] sm:$0xff]
        %v1034 = vld [vmem:[#allocation3 + $0x30] sm:$0xff]
        %v1035 = vld [vmem:[#allocation3 + $0x38] sm:$0xff]
        %v1036 = vld [vmem:[%s8] sm:$0x1]
        %v1038 = vlaneseq
        %v1039 = vshrl.u32 %v1038, 7
        %v1040 = vsub.s32 0, %v1039
        %v1041 = vrot.slane %v1036, %v1040
        %vm1043 = vcmask 523264
        %v1045 = vsel %vm1043, %v1024, 0
        %v1048 = vsel %vm1043, %v1025, 0
        %v1051 = vsel %vm1043, %v1026, 0
        %v1054 = vsel %vm1043, %v1027, 0
        %1056 = vmatprep.subr.mxu0 0.0
        %1057 = vmatpush1.msra.mxu0 %v1028
        %1058 = vmatprep.subr.mxu0 0.0
        %1059 = vmatpush1.msra.mxu0 %v1029
        %1060 = vmatprep.subr.mxu0 0.0
        %1061 = vmatpush1.msra.mxu0 %v1030
        %1062 = vmatprep.subr.mxu0 0.0
        %1063 = vmatpush1.msra.mxu0 %v1031
        %1064 = vmatprep.subr.mxu0 0.0
        %1065 = vmatpush1.msra.mxu0 %v1032
        %1066 = vmatprep.subr.mxu0 0.0
        %1067 = vmatpush1.msra.mxu0 %v1033
        %1068 = vmatprep.subr.mxu0 0.0
        %1069 = vmatpush1.msra.mxu0 %v1034
        %1070 = vmatprep.subr.mxu0 0.0
        %1071 = vmatpush1.msra.mxu0 %v1035
        %1072 = vmatprep.subr.mxu0 0.0
        %1073 = vmatpush1.msra.mxu0 0.0
        %1074 = vmatprep.subr.mxu0 0.0
        %1075 = vmatpush1.msra.mxu0 0.0
        %1076 = vmatprep.subr.mxu0 0.0
        %1077 = vmatpush1.msra.mxu0 0.0
        %1078 = vmatprep.subr.mxu0 0.0
        %1079 = vmatpush1.msra.mxu0 0.0
        %1080 = vmatprep.subr.mxu0 0.0
        %1081 = vmatpush1.msra.mxu0 0.0
        %1082 = vmatprep.subr.mxu0 0.0
        %1083 = vmatpush1.msra.mxu0 0.0
        %1084 = vmatprep.subr.mxu0 0.0
        %1085 = vmatpush1.msra.mxu0 0.0
        %1086 = vmatprep.subr.mxu0 0.0
        %1087 = vmatpush1.msra.mxu0 0.0
        %1088 = vmatprep.subr.mxu0 0.0
        %1089 = vmatpush1.msra.mxu0 0.0
        %1090 = vmatprep.subr.mxu0 0.0
        %1091 = vmatpush1.msra.mxu0 0.0
        %1092 = vmatprep.subr.mxu0 0.0
        %1093 = vmatpush1.msra.mxu0 0.0
        %1094 = vmatprep.subr.mxu0 0.0
        %1095 = vmatpush1.msra.mxu0 0.0
        %1096 = vmatprep.subr.mxu0 0.0
        %1097 = vmatpush1.msra.mxu0 0.0
        %1098 = vmatprep.subr.mxu0 0.0
        %1099 = vmatpush1.msra.mxu0 0.0
        %1100 = vmatprep.subr.mxu0 0.0
        %1101 = vmatpush1.msra.mxu0 0.0
        %1102 = vmatprep.subr.mxu0 0.0
        %1103 = vmatpush1.msra.mxu0 0.0
        %1104 = vmatprep.subr.mxu0 0.0
        %1105 = vmatpush1.msra.mxu0 0.0
        %1106 = vmatprep.subr.mxu0 0.0
        %1107 = vmatpush1.msra.mxu0 0.0
        %1108 = vmatprep.subr.mxu0 0.0
        %1109 = vmatpush1.msra.mxu0 0.0
        %1110 = vmatprep.subr.mxu0 0.0
        %1111 = vmatpush1.msra.mxu0 0.0
        %1112 = vmatprep.subr.mxu0 0.0
        %1113 = vmatpush1.msra.mxu0 0.0
        %1114 = vmatprep.subr.mxu0 0.0
        %1115 = vmatpush1.msra.mxu0 0.0
        %1116 = vmatprep.subr.mxu0 0.0
        %1117 = vmatpush1.msra.mxu0 0.0
        %1118 = vmatprep.subr.mxu0 0.0
        %1119 = vmatpush1.msra.mxu0 0.0
        %1120 = vmatprep.mubr.f32.mxu0 0.0
        %1121 = vmatmul.mubr.f32.gmra.mrb[0].mxu0 %v1045
        %v1122 = vpop.f32.mrb[0].mxu0
        %v1123 = vadd.f32 %v1041, %v1122
        %v1124 = vpop.f32.mrb[0].mxu0
        %1125 = vmatprep.mubr.f32.mxu0 0.0
        %1126 = vmatmul.mubr.f32.gmra.mrb[0].mxu0 %v1048
        %v1127 = vpop.f32.mrb[0].mxu0
        %v1128 = vadd.f32 %v1041, %v1127
        %v1129 = vpop.f32.mrb[0].mxu0
        %1130 = vmatprep.mubr.f32.mxu0 0.0
        %1131 = vmatmul.mubr.f32.gmra.mrb[0].mxu0 %v1051
        %v1132 = vpop.f32.mrb[0].mxu0
        %v1133 = vadd.f32 %v1041, %v1132
        %v1134 = vpop.f32.mrb[0].mxu0
        %1135 = vmatprep.mubr.f32.mxu0 0.0
        %1136 = vmatmul.mubr.f32.gmra.mrb[0].mxu0 %v1054
        %v1137 = vpop.f32.mrb[0].mxu0
        %v1138 = vadd.f32 %v1041, %v1137
        %v1139 = vpop.f32.mrb[0].mxu0
        %1140 = vdwg.mxu0
        %v1141 = vmax.f32 %v1123, 0.0
        %v1142 = vmax.f32 %v1128, 0.0
        %v1143 = vmax.f32 %v1133, 0.0
        %v1144 = vmax.f32 %v1138, 0.0
        %v1145 = vld [vmem:[%s9] sm:$0xff]
        %v1146 = vld [vmem:[%s9 + $0x8] sm:$0xff]
        %v1147 = vld [vmem:[%s9 + $0x10] sm:$0xff]
        %v1148 = vld [vmem:[%s9 + $0x18] sm:$0xff]
        %v1149 = vld [vmem:[%s9 + $0x20] sm:$0xff]
        %v1150 = vld [vmem:[%s9 + $0x28] sm:$0xff]
        %v1151 = vld [vmem:[%s9 + $0x30] sm:$0xff]
        %v1152 = vld [vmem:[%s9 + $0x38] sm:$0xff]
        %v1153 = vld [vmem:[%s9 + $0x40] sm:$0xff]
        %v1154 = vld [vmem:[%s9 + $0x48] sm:$0xff]
        %v1155 = vld [vmem:[%s9 + $0x50] sm:$0xff]
        %v1156 = vld [vmem:[%s9 + $0x58] sm:$0xff]
        %v1157 = vld [vmem:[%s9 + $0x60] sm:$0xff]
        %v1158 = vld [vmem:[%s9 + $0x68] sm:$0xff]
        %v1159 = vld [vmem:[%s9 + $0x70] sm:$0xff]
        %v1160 = vld [vmem:[%s9 + $0x78] sm:$0xff]
        %1161 = vmatprep.subr.mxu0 0.0
        %1162 = vmatpush1.msra.mxu0 %v1145
        %1163 = vmatprep.subr.mxu0 0.0
        %1164 = vmatpush1.msra.mxu0 %v1146
        %1165 = vmatprep.subr.mxu0 0.0
        %1166 = vmatpush1.msra.mxu0 %v1147
        %1167 = vmatprep.subr.mxu0 0.0
        %1168 = vmatpush1.msra.mxu0 %v1148
        %1169 = vmatprep.subr.mxu0 0.0
        %1170 = vmatpush1.msra.mxu0 %v1149
        %1171 = vmatprep.subr.mxu0 0.0
        %1172 = vmatpush1.msra.mxu0 %v1150
        %1173 = vmatprep.subr.mxu0 0.0
        %1174 = vmatpush1.msra.mxu0 %v1151
        %1175 = vmatprep.subr.mxu0 0.0
        %1176 = vmatpush1.msra.mxu0 %v1152
        %1177 = vmatprep.subr.mxu0 0.0
        %1178 = vmatpush1.msra.mxu0 %v1153
        %1179 = vmatprep.subr.mxu0 0.0
        %1180 = vmatpush1.msra.mxu0 %v1154
        %1181 = vmatprep.subr.mxu0 0.0
        %1182 = vmatpush1.msra.mxu0 %v1155
        %1183 = vmatprep.subr.mxu0 0.0
        %1184 = vmatpush1.msra.mxu0 %v1156
        %1185 = vmatprep.subr.mxu0 0.0
        %1186 = vmatpush1.msra.mxu0 %v1157
        %1187 = vmatprep.subr.mxu0 0.0
        %1188 = vmatpush1.msra.mxu0 %v1158
        %1189 = vmatprep.subr.mxu0 0.0
        %1190 = vmatpush1.msra.mxu0 %v1159
        %1191 = vmatprep.subr.mxu0 0.0
        %1192 = vmatpush1.msra.mxu0 %v1160
        %1193 = vmatprep.subr.mxu0 0.0
        %1194 = vmatpush1.msra.mxu0 0.0
        %1195 = vmatprep.subr.mxu0 0.0
        %1196 = vmatpush1.msra.mxu0 0.0
        %1197 = vmatprep.subr.mxu0 0.0
        %1198 = vmatpush1.msra.mxu0 0.0
        %1199 = vmatprep.subr.mxu0 0.0
        %1200 = vmatpush1.msra.mxu0 0.0
        %1201 = vmatprep.subr.mxu0 0.0
        %1202 = vmatpush1.msra.mxu0 0.0
        %1203 = vmatprep.subr.mxu0 0.0
        %1204 = vmatpush1.msra.mxu0 0.0
        %1205 = vmatprep.subr.mxu0 0.0
        %1206 = vmatpush1.msra.mxu0 0.0
        %1207 = vmatprep.subr.mxu0 0.0
        %1208 = vmatpush1.msra.mxu0 0.0
        %1209 = vmatprep.subr.mxu0 0.0
        %1210 = vmatpush1.msra.mxu0 0.0
        %1211 = vmatprep.subr.mxu0 0.0
        %1212 = vmatpush1.msra.mxu0 0.0
        %1213 = vmatprep.subr.mxu0 0.0
        %1214 = vmatpush1.msra.mxu0 0.0
        %1215 = vmatprep.subr.mxu0 0.0
        %1216 = vmatpush1.msra.mxu0 0.0
        %1217 = vmatprep.subr.mxu0 0.0
        %1218 = vmatpush1.msra.mxu0 0.0
        %1219 = vmatprep.subr.mxu0 0.0
        %1220 = vmatpush1.msra.mxu0 0.0
        %1221 = vmatprep.subr.mxu0 0.0
        %1222 = vmatpush1.msra.mxu0 0.0
        %1223 = vmatprep.subr.mxu0 0.0
        %1224 = vmatpush1.msra.mxu0 0.0
        %1225 = vmatprep.mubr.f32.mxu0 0.0
        %1226 = vmatmul.mubr.f32.gmra.mrb[0].mxu0 %v1141
        %v1227 = vpop.f32.mrb[0].mxu0
        %v1228 = vadd.f32 0.0, %v1227
        %v1229 = vpop.f32.mrb[0].mxu0
        %1230 = vmatprep.mubr.f32.mxu0 0.0
        %1231 = vmatmul.mubr.f32.gmra.mrb[0].mxu0 %v1142
        %v1232 = vpop.f32.mrb[0].mxu0
        %v1233 = vadd.f32 0.0, %v1232
        %v1234 = vpop.f32.mrb[0].mxu0
        %1235 = vmatprep.mubr.f32.mxu0 0.0
        %1236 = vmatmul.mubr.f32.gmra.mrb[0].mxu0 %v1143
        %v1237 = vpop.f32.mrb[0].mxu0
        %v1238 = vadd.f32 0.0, %v1237
        %v1239 = vpop.f32.mrb[0].mxu0
        %1240 = vmatprep.mubr.f32.mxu0 0.0
        %1241 = vmatmul.mubr.f32.gmra.mrb[0].mxu0 %v1144
        %v1242 = vpop.f32.mrb[0].mxu0
        %v1243 = vadd.f32 0.0, %v1242
        %v1244 = vpop.f32.mrb[0].mxu0
        %1245 = vdwg.mxu0
        %vm1246 = vcmask 785408
        %1247 = vst.msk [vmem:[#allocation4] sm:$0xff] %vm1246, %v1228
        %1248 = vst.msk [vmem:[#allocation4 + $0x8] sm:$0xff] %vm1246, %v1233
        %1249 = vst.msk [vmem:[#allocation4 + $0x10] sm:$0xff] %vm1246, %v1238
        %1250 = vst.msk [vmem:[#allocation4 + $0x18] sm:$0xff] %vm1246, %v1243
        %s1251 = scalar_lea.vmem %s9, 128
        %v1252 = vld [vmem:[%s1251] sm:$0xff]
        %v1253 = vld [vmem:[%s1251 + $0x8] sm:$0xff]
        %v1254 = vld [vmem:[%s1251 + $0x10] sm:$0xff]
        %v1255 = vld [vmem:[%s1251 + $0x18] sm:$0xff]
        %v1256 = vld [vmem:[%s1251 + $0x20] sm:$0xff]
        %v1257 = vld [vmem:[%s1251 + $0x28] sm:$0xff]
        %v1258 = vld [vmem:[%s1251 + $0x30] sm:$0xff]
        %v1259 = vld [vmem:[%s1251 + $0x38] sm:$0xff]
        %v1260 = vld [vmem:[%s1251 + $0x40] sm:$0xff]
        %v1261 = vld [vmem:[%s1251 + $0x48] sm:$0xff]
        %v1262 = vld [vmem:[%s1251 + $0x50] sm:$0xff]
        %v1263 = vld [vmem:[%s1251 + $0x58] sm:$0xff]
        %v1264 = vld [vmem:[%s1251 + $0x60] sm:$0xff]
        %v1265 = vld [vmem:[%s1251 + $0x68] sm:$0xff]
        %v1266 = vld [vmem:[%s1251 + $0x70] sm:$0xff]
        %v1267 = vld [vmem:[%s1251 + $0x78] sm:$0xff]
        %1268 = vmatprep.subr.mxu0 0.0
        %1269 = vmatpush1.msra.mxu0 %v1252
        %1270 = vmatprep.subr.mxu0 0.0
        %1271 = vmatpush1.msra.mxu0 %v1253
        %1272 = vmatprep.subr.mxu0 0.0
        %1273 = vmatpush1.msra.mxu0 %v1254
        %1274 = vmatprep.subr.mxu0 0.0
        %1275 = vmatpush1.msra.mxu0 %v1255
        %1276 = vmatprep.subr.mxu0 0.0
        %1277 = vmatpush1.msra.mxu0 %v1256
        %1278 = vmatprep.subr.mxu0 0.0
        %1279 = vmatpush1.msra.mxu0 %v1257
        %1280 = vmatprep.subr.mxu0 0.0
        %1281 = vmatpush1.msra.mxu0 %v1258
        %1282 = vmatprep.subr.mxu0 0.0
        %1283 = vmatpush1.msra.mxu0 %v1259
        %1284 = vmatprep.subr.mxu0 0.0
        %1285 = vmatpush1.msra.mxu0 %v1260
        %1286 = vmatprep.subr.mxu0 0.0
        %1287 = vmatpush1.msra.mxu0 %v1261
        %1288 = vmatprep.subr.mxu0 0.0
        %1289 = vmatpush1.msra.mxu0 %v1262
        %1290 = vmatprep.subr.mxu0 0.0
        %1291 = vmatpush1.msra.mxu0 %v1263
        %1292 = vmatprep.subr.mxu0 0.0
        %1293 = vmatpush1.msra.mxu0 %v1264
        %1294 = vmatprep.subr.mxu0 0.0
        %1295 = vmatpush1.msra.mxu0 %v1265
        %1296 = vmatprep.subr.mxu0 0.0
        %1297 = vmatpush1.msra.mxu0 %v1266
        %1298 = vmatprep.subr.mxu0 0.0
        %1299 = vmatpush1.msra.mxu0 %v1267
        %1300 = vmatprep.subr.mxu0 0.0
        %1301 = vmatpush1.msra.mxu0 0.0
        %1302 = vmatprep.subr.mxu0 0.0
        %1303 = vmatpush1.msra.mxu0 0.0
        %1304 = vmatprep.subr.mxu0 0.0
        %1305 = vmatpush1.msra.mxu0 0.0
        %1306 = vmatprep.subr.mxu0 0.0
        %1307 = vmatpush1.msra.mxu0 0.0
        %1308 = vmatprep.subr.mxu0 0.0
        %1309 = vmatpush1.msra.mxu0 0.0
        %1310 = vmatprep.subr.mxu0 0.0
        %1311 = vmatpush1.msra.mxu0 0.0
        %1312 = vmatprep.subr.mxu0 0.0
        %1313 = vmatpush1.msra.mxu0 0.0
        %1314 = vmatprep.subr.mxu0 0.0
        %1315 = vmatpush1.msra.mxu0 0.0
        %1316 = vmatprep.subr.mxu0 0.0
        %1317 = vmatpush1.msra.mxu0 0.0
        %1318 = vmatprep.subr.mxu0 0.0
        %1319 = vmatpush1.msra.mxu0 0.0
        %1320 = vmatprep.subr.mxu0 0.0
        %1321 = vmatpush1.msra.mxu0 0.0
        %1322 = vmatprep.subr.mxu0 0.0
        %1323 = vmatpush1.msra.mxu0 0.0
        %1324 = vmatprep.subr.mxu0 0.0
        %1325 = vmatpush1.msra.mxu0 0.0
        %1326 = vmatprep.subr.mxu0 0.0
        %1327 = vmatpush1.msra.mxu0 0.0
        %1328 = vmatprep.subr.mxu0 0.0
        %1329 = vmatpush1.msra.mxu0 0.0
        %1330 = vmatprep.subr.mxu0 0.0
        %1331 = vmatpush1.msra.mxu0 0.0
        %1332 = vmatprep.mubr.f32.mxu0 0.0
        %1333 = vmatmul.mubr.f32.gmra.mrb[0].mxu0 %v1141
        %v1334 = vpop.f32.mrb[0].mxu0
        %v1335 = vadd.f32 0.0, %v1334
        %v1336 = vpop.f32.mrb[0].mxu0
        %1337 = vmatprep.mubr.f32.mxu0 0.0
        %1338 = vmatmul.mubr.f32.gmra.mrb[0].mxu0 %v1142
        %v1339 = vpop.f32.mrb[0].mxu0
        %v1340 = vadd.f32 0.0, %v1339
        %v1341 = vpop.f32.mrb[0].mxu0
        %1342 = vmatprep.mubr.f32.mxu0 0.0
        %1343 = vmatmul.mubr.f32.gmra.mrb[0].mxu0 %v1143
        %v1344 = vpop.f32.mrb[0].mxu0
        %v1345 = vadd.f32 0.0, %v1344
        %v1346 = vpop.f32.mrb[0].mxu0
        %1347 = vmatprep.mubr.f32.mxu0 0.0
        %1348 = vmatmul.mubr.f32.gmra.mrb[0].mxu0 %v1144
        %v1349 = vpop.f32.mrb[0].mxu0
        %v1350 = vadd.f32 0.0, %v1349
        %v1351 = vpop.f32.mrb[0].mxu0
        %1352 = vdwg.mxu0
        %1353 = vst.msk [vmem:[#allocation4 + $0x20] sm:$0xff] %vm1246, %v1335
        %1354 = vst.msk [vmem:[#allocation4 + $0x28] sm:$0xff] %vm1246, %v1340
        %1355 = vst.msk [vmem:[#allocation4 + $0x30] sm:$0xff] %vm1246, %v1345
        %1356 = vst.msk [vmem:[#allocation4 + $0x38] sm:$0xff] %vm1246, %v1350
        %s1357 = scalar_lea.vmem %s9, 256
        %v1358 = vld [vmem:[%s1357] sm:$0xff]
        %v1359 = vld [vmem:[%s1357 + $0x8] sm:$0xff]
        %v1360 = vld [vmem:[%s1357 + $0x10] sm:$0xff]
        %v1361 = vld [vmem:[%s1357 + $0x18] sm:$0xff]
        %v1362 = vld [vmem:[%s1357 + $0x20] sm:$0xff]
        %v1363 = vld [vmem:[%s1357 + $0x28] sm:$0xff]
        %v1364 = vld [vmem:[%s1357 + $0x30] sm:$0xff]
        %v1365 = vld [vmem:[%s1357 + $0x38] sm:$0xff]
        %v1366 = vld [vmem:[%s1357 + $0x40] sm:$0xff]
        %v1367 = vld [vmem:[%s1357 + $0x48] sm:$0xff]
        %v1368 = vld [vmem:[%s1357 + $0x50] sm:$0xff]
        %v1369 = vld [vmem:[%s1357 + $0x58] sm:$0xff]
        %v1370 = vld [vmem:[%s1357 + $0x60] sm:$0xff]
        %v1371 = vld [vmem:[%s1357 + $0x68] sm:$0xff]
        %v1372 = vld [vmem:[%s1357 + $0x70] sm:$0xff]
        %v1373 = vld [vmem:[%s1357 + $0x78] sm:$0xff]
        %1374 = vmatprep.subr.mxu0 0.0
        %1375 = vmatpush1.msra.mxu0 %v1358
        %1376 = vmatprep.subr.mxu0 0.0
        %1377 = vmatpush1.msra.mxu0 %v1359
        %1378 = vmatprep.subr.mxu0 0.0
        %1379 = vmatpush1.msra.mxu0 %v1360
        %1380 = vmatprep.subr.mxu0 0.0
        %1381 = vmatpush1.msra.mxu0 %v1361
        %1382 = vmatprep.subr.mxu0 0.0
        %1383 = vmatpush1.msra.mxu0 %v1362
        %1384 = vmatprep.subr.mxu0 0.0
        %1385 = vmatpush1.msra.mxu0 %v1363
        %1386 = vmatprep.subr.mxu0 0.0
        %1387 = vmatpush1.msra.mxu0 %v1364
        %1388 = vmatprep.subr.mxu0 0.0
        %1389 = vmatpush1.msra.mxu0 %v1365
        %1390 = vmatprep.subr.mxu0 0.0
        %1391 = vmatpush1.msra.mxu0 %v1366
        %1392 = vmatprep.subr.mxu0 0.0
        %1393 = vmatpush1.msra.mxu0 %v1367
        %1394 = vmatprep.subr.mxu0 0.0
        %1395 = vmatpush1.msra.mxu0 %v1368
        %1396 = vmatprep.subr.mxu0 0.0
        %1397 = vmatpush1.msra.mxu0 %v1369
        %1398 = vmatprep.subr.mxu0 0.0
        %1399 = vmatpush1.msra.mxu0 %v1370
        %1400 = vmatprep.subr.mxu0 0.0
        %1401 = vmatpush1.msra.mxu0 %v1371
        %1402 = vmatprep.subr.mxu0 0.0
        %1403 = vmatpush1.msra.mxu0 %v1372
        %1404 = vmatprep.subr.mxu0 0.0
        %1405 = vmatpush1.msra.mxu0 %v1373
        %1406 = vmatprep.subr.mxu0 0.0
        %1407 = vmatpush1.msra.mxu0 0.0
        %1408 = vmatprep.subr.mxu0 0.0
        %1409 = vmatpush1.msra.mxu0 0.0
        %1410 = vmatprep.subr.mxu0 0.0
        %1411 = vmatpush1.msra.mxu0 0.0
        %1412 = vmatprep.subr.mxu0 0.0
        %1413 = vmatpush1.msra.mxu0 0.0
        %1414 = vmatprep.subr.mxu0 0.0
        %1415 = vmatpush1.msra.mxu0 0.0
        %1416 = vmatprep.subr.mxu0 0.0
        %1417 = vmatpush1.msra.mxu0 0.0
        %1418 = vmatprep.subr.mxu0 0.0
        %1419 = vmatpush1.msra.mxu0 0.0
        %1420 = vmatprep.subr.mxu0 0.0
        %1421 = vmatpush1.msra.mxu0 0.0
        %1422 = vmatprep.subr.mxu0 0.0
        %1423 = vmatpush1.msra.mxu0 0.0
        %1424 = vmatprep.subr.mxu0 0.0
        %1425 = vmatpush1.msra.mxu0 0.0
        %1426 = vmatprep.subr.mxu0 0.0
        %1427 = vmatpush1.msra.mxu0 0.0
        %1428 = vmatprep.subr.mxu0 0.0
        %1429 = vmatpush1.msra.mxu0 0.0
        %1430 = vmatprep.subr.mxu0 0.0
        %1431 = vmatpush1.msra.mxu0 0.0
        %1432 = vmatprep.subr.mxu0 0.0
        %1433 = vmatpush1.msra.mxu0 0.0
        %1434 = vmatprep.subr.mxu0 0.0
        %1435 = vmatpush1.msra.mxu0 0.0
        %1436 = vmatprep.subr.mxu0 0.0
        %1437 = vmatpush1.msra.mxu0 0.0
        %1438 = vmatprep.mubr.f32.mxu0 0.0
        %1439 = vmatmul.mubr.f32.gmra.mrb[0].mxu0 %v1141
        %v1440 = vpop.f32.mrb[0].mxu0
        %v1441 = vadd.f32 0.0, %v1440
        %v1442 = vpop.f32.mrb[0].mxu0
        %1443 = vmatprep.mubr.f32.mxu0 0.0
        %1444 = vmatmul.mubr.f32.gmra.mrb[0].mxu0 %v1142
        %v1445 = vpop.f32.mrb[0].mxu0
        %v1446 = vadd.f32 0.0, %v1445
        %v1447 = vpop.f32.mrb[0].mxu0
        %1448 = vmatprep.mubr.f32.mxu0 0.0
        %1449 = vmatmul.mubr.f32.gmra.mrb[0].mxu0 %v1143
        %v1450 = vpop.f32.mrb[0].mxu0
        %v1451 = vadd.f32 0.0, %v1450
        %v1452 = vpop.f32.mrb[0].mxu0
        %1453 = vmatprep.mubr.f32.mxu0 0.0
        %1454 = vmatmul.mubr.f32.gmra.mrb[0].mxu0 %v1144
        %v1455 = vpop.f32.mrb[0].mxu0
        %v1456 = vadd.f32 0.0, %v1455
        %v1457 = vpop.f32.mrb[0].mxu0
        %1458 = vdwg.mxu0
        %1459 = vst.msk [vmem:[#allocation4 + $0x40] sm:$0xff] %vm1246, %v1441
        %1460 = vst.msk [vmem:[#allocation4 + $0x48] sm:$0xff] %vm1246, %v1446
        %1461 = vst.msk [vmem:[#allocation4 + $0x50] sm:$0xff] %vm1246, %v1451
        %1462 = vst.msk [vmem:[#allocation4 + $0x58] sm:$0xff] %vm1246, %v1456
        %s1463 = scalar_lea.vmem %s9, 384
        %v1464 = vld [vmem:[%s1463] sm:$0xff]
        %v1465 = vld [vmem:[%s1463 + $0x8] sm:$0xff]
        %v1466 = vld [vmem:[%s1463 + $0x10] sm:$0xff]
        %v1467 = vld [vmem:[%s1463 + $0x18] sm:$0xff]
        %v1468 = vld [vmem:[%s1463 + $0x20] sm:$0xff]
        %v1469 = vld [vmem:[%s1463 + $0x28] sm:$0xff]
        %v1470 = vld [vmem:[%s1463 + $0x30] sm:$0xff]
        %v1471 = vld [vmem:[%s1463 + $0x38] sm:$0xff]
        %v1472 = vld [vmem:[%s1463 + $0x40] sm:$0xff]
        %v1473 = vld [vmem:[%s1463 + $0x48] sm:$0xff]
        %v1474 = vld [vmem:[%s1463 + $0x50] sm:$0xff]
        %v1475 = vld [vmem:[%s1463 + $0x58] sm:$0xff]
        %v1476 = vld [vmem:[%s1463 + $0x60] sm:$0xff]
        %v1477 = vld [vmem:[%s1463 + $0x68] sm:$0xff]
        %v1478 = vld [vmem:[%s1463 + $0x70] sm:$0xff]
        %v1479 = vld [vmem:[%s1463 + $0x78] sm:$0xff]
        %1480 = vmatprep.subr.mxu0 0.0
        %1481 = vmatpush1.msra.mxu0 %v1464
        %1482 = vmatprep.subr.mxu0 0.0
        %1483 = vmatpush1.msra.mxu0 %v1465
        %1484 = vmatprep.subr.mxu0 0.0
        %1485 = vmatpush1.msra.mxu0 %v1466
        %1486 = vmatprep.subr.mxu0 0.0
        %1487 = vmatpush1.msra.mxu0 %v1467
        %1488 = vmatprep.subr.mxu0 0.0
        %1489 = vmatpush1.msra.mxu0 %v1468
        %1490 = vmatprep.subr.mxu0 0.0
        %1491 = vmatpush1.msra.mxu0 %v1469
        %1492 = vmatprep.subr.mxu0 0.0
        %1493 = vmatpush1.msra.mxu0 %v1470
        %1494 = vmatprep.subr.mxu0 0.0
        %1495 = vmatpush1.msra.mxu0 %v1471
        %1496 = vmatprep.subr.mxu0 0.0
        %1497 = vmatpush1.msra.mxu0 %v1472
        %1498 = vmatprep.subr.mxu0 0.0
        %1499 = vmatpush1.msra.mxu0 %v1473
        %1500 = vmatprep.subr.mxu0 0.0
        %1501 = vmatpush1.msra.mxu0 %v1474
        %1502 = vmatprep.subr.mxu0 0.0
        %1503 = vmatpush1.msra.mxu0 %v1475
        %1504 = vmatprep.subr.mxu0 0.0
        %1505 = vmatpush1.msra.mxu0 %v1476
        %1506 = vmatprep.subr.mxu0 0.0
        %1507 = vmatpush1.msra.mxu0 %v1477
        %1508 = vmatprep.subr.mxu0 0.0
        %1509 = vmatpush1.msra.mxu0 %v1478
        %1510 = vmatprep.subr.mxu0 0.0
        %1511 = vmatpush1.msra.mxu0 %v1479
        %1512 = vmatprep.subr.mxu0 0.0
        %1513 = vmatpush1.msra.mxu0 0.0
        %1514 = vmatprep.subr.mxu0 0.0
        %1515 = vmatpush1.msra.mxu0 0.0
        %1516 = vmatprep.subr.mxu0 0.0
        %1517 = vmatpush1.msra.mxu0 0.0
        %1518 = vmatprep.subr.mxu0 0.0
        %1519 = vmatpush1.msra.mxu0 0.0
        %1520 = vmatprep.subr.mxu0 0.0
        %1521 = vmatpush1.msra.mxu0 0.0
        %1522 = vmatprep.subr.mxu0 0.0
        %1523 = vmatpush1.msra.mxu0 0.0
        %1524 = vmatprep.subr.mxu0 0.0
        %1525 = vmatpush1.msra.mxu0 0.0
        %1526 = vmatprep.subr.mxu0 0.0
        %1527 = vmatpush1.msra.mxu0 0.0
        %1528 = vmatprep.subr.mxu0 0.0
        %1529 = vmatpush1.msra.mxu0 0.0
        %1530 = vmatprep.subr.mxu0 0.0
        %1531 = vmatpush1.msra.mxu0 0.0
        %1532 = vmatprep.subr.mxu0 0.0
        %1533 = vmatpush1.msra.mxu0 0.0
        %1534 = vmatprep.subr.mxu0 0.0
        %1535 = vmatpush1.msra.mxu0 0.0
        %1536 = vmatprep.subr.mxu0 0.0
        %1537 = vmatpush1.msra.mxu0 0.0
        %1538 = vmatprep.subr.mxu0 0.0
        %1539 = vmatpush1.msra.mxu0 0.0
        %1540 = vmatprep.subr.mxu0 0.0
        %1541 = vmatpush1.msra.mxu0 0.0
        %1542 = vmatprep.subr.mxu0 0.0
        %1543 = vmatpush1.msra.mxu0 0.0
        %1544 = vmatprep.mubr.f32.mxu0 0.0
        %1545 = vmatmul.mubr.f32.gmra.mrb[0].mxu0 %v1141
        %v1546 = vpop.f32.mrb[0].mxu0
        %v1547 = vadd.f32 0.0, %v1546
        %v1548 = vpop.f32.mrb[0].mxu0
        %1549 = vmatprep.mubr.f32.mxu0 0.0
        %1550 = vmatmul.mubr.f32.gmra.mrb[0].mxu0 %v1142
        %v1551 = vpop.f32.mrb[0].mxu0
        %v1552 = vadd.f32 0.0, %v1551
        %v1553 = vpop.f32.mrb[0].mxu0
        %1554 = vmatprep.mubr.f32.mxu0 0.0
        %1555 = vmatmul.mubr.f32.gmra.mrb[0].mxu0 %v1143
        %v1556 = vpop.f32.mrb[0].mxu0
        %v1557 = vadd.f32 0.0, %v1556
        %v1558 = vpop.f32.mrb[0].mxu0
        %1559 = vmatprep.mubr.f32.mxu0 0.0
        %1560 = vmatmul.mubr.f32.gmra.mrb[0].mxu0 %v1144
        %v1561 = vpop.f32.mrb[0].mxu0
        %v1562 = vadd.f32 0.0, %v1561
        %v1563 = vpop.f32.mrb[0].mxu0
        %1564 = vdwg.mxu0
        %1565 = vst.msk [vmem:[#allocation4 + $0x60] sm:$0xff] %vm1246, %v1547
        %1566 = vst.msk [vmem:[#allocation4 + $0x68] sm:$0xff] %vm1246, %v1552
        %1567 = vst.msk [vmem:[#allocation4 + $0x70] sm:$0xff] %vm1246, %v1557
        %1568 = vst.msk [vmem:[#allocation4 + $0x78] sm:$0xff] %vm1246, %v1562
        %s1569 = scalar_lea.vmem %s9, 512
        %v1570 = vld [vmem:[%s1569] sm:$0xff]
        %v1571 = vld [vmem:[%s1569 + $0x8] sm:$0xff]
        %v1572 = vld [vmem:[%s1569 + $0x10] sm:$0xff]
        %v1573 = vld [vmem:[%s1569 + $0x18] sm:$0xff]
        %v1574 = vld [vmem:[%s1569 + $0x20] sm:$0xff]
        %v1575 = vld [vmem:[%s1569 + $0x28] sm:$0xff]
        %v1576 = vld [vmem:[%s1569 + $0x30] sm:$0xff]
        %v1577 = vld [vmem:[%s1569 + $0x38] sm:$0xff]
        %v1578 = vld [vmem:[%s1569 + $0x40] sm:$0xff]
        %v1579 = vld [vmem:[%s1569 + $0x48] sm:$0xff]
        %v1580 = vld [vmem:[%s1569 + $0x50] sm:$0xff]
        %v1581 = vld [vmem:[%s1569 + $0x58] sm:$0xff]
        %v1582 = vld [vmem:[%s1569 + $0x60] sm:$0xff]
        %v1583 = vld [vmem:[%s1569 + $0x68] sm:$0xff]
        %v1584 = vld [vmem:[%s1569 + $0x70] sm:$0xff]
        %v1585 = vld [vmem:[%s1569 + $0x78] sm:$0xff]
        %1586 = vmatprep.subr.mxu0 0.0
        %1587 = vmatpush1.msra.mxu0 %v1570
        %1588 = vmatprep.subr.mxu0 0.0
        %1589 = vmatpush1.msra.mxu0 %v1571
        %1590 = vmatprep.subr.mxu0 0.0
        %1591 = vmatpush1.msra.mxu0 %v1572
        %1592 = vmatprep.subr.mxu0 0.0
        %1593 = vmatpush1.msra.mxu0 %v1573
        %1594 = vmatprep.subr.mxu0 0.0
        %1595 = vmatpush1.msra.mxu0 %v1574
        %1596 = vmatprep.subr.mxu0 0.0
        %1597 = vmatpush1.msra.mxu0 %v1575
        %1598 = vmatprep.subr.mxu0 0.0
        %1599 = vmatpush1.msra.mxu0 %v1576
        %1600 = vmatprep.subr.mxu0 0.0
        %1601 = vmatpush1.msra.mxu0 %v1577
        %1602 = vmatprep.subr.mxu0 0.0
        %1603 = vmatpush1.msra.mxu0 %v1578
        %1604 = vmatprep.subr.mxu0 0.0
        %1605 = vmatpush1.msra.mxu0 %v1579
        %1606 = vmatprep.subr.mxu0 0.0
        %1607 = vmatpush1.msra.mxu0 %v1580
        %1608 = vmatprep.subr.mxu0 0.0
        %1609 = vmatpush1.msra.mxu0 %v1581
        %1610 = vmatprep.subr.mxu0 0.0
        %1611 = vmatpush1.msra.mxu0 %v1582
        %1612 = vmatprep.subr.mxu0 0.0
        %1613 = vmatpush1.msra.mxu0 %v1583
        %1614 = vmatprep.subr.mxu0 0.0
        %1615 = vmatpush1.msra.mxu0 %v1584
        %1616 = vmatprep.subr.mxu0 0.0
        %1617 = vmatpush1.msra.mxu0 %v1585
        %1618 = vmatprep.subr.mxu0 0.0
        %1619 = vmatpush1.msra.mxu0 0.0
        %1620 = vmatprep.subr.mxu0 0.0
        %1621 = vmatpush1.msra.mxu0 0.0
        %1622 = vmatprep.subr.mxu0 0.0
        %1623 = vmatpush1.msra.mxu0 0.0
        %1624 = vmatprep.subr.mxu0 0.0
        %1625 = vmatpush1.msra.mxu0 0.0
        %1626 = vmatprep.subr.mxu0 0.0
        %1627 = vmatpush1.msra.mxu0 0.0
        %1628 = vmatprep.subr.mxu0 0.0
        %1629 = vmatpush1.msra.mxu0 0.0
        %1630 = vmatprep.subr.mxu0 0.0
        %1631 = vmatpush1.msra.mxu0 0.0
        %1632 = vmatprep.subr.mxu0 0.0
        %1633 = vmatpush1.msra.mxu0 0.0
        %1634 = vmatprep.subr.mxu0 0.0
        %1635 = vmatpush1.msra.mxu0 0.0
        %1636 = vmatprep.subr.mxu0 0.0
        %1637 = vmatpush1.msra.mxu0 0.0
        %1638 = vmatprep.subr.mxu0 0.0
        %1639 = vmatpush1.msra.mxu0 0.0
        %1640 = vmatprep.subr.mxu0 0.0
        %1641 = vmatpush1.msra.mxu0 0.0
        %1642 = vmatprep.subr.mxu0 0.0
        %1643 = vmatpush1.msra.mxu0 0.0
        %1644 = vmatprep.subr.mxu0 0.0
        %1645 = vmatpush1.msra.mxu0 0.0
        %1646 = vmatprep.subr.mxu0 0.0
        %1647 = vmatpush1.msra.mxu0 0.0
        %1648 = vmatprep.subr.mxu0 0.0
        %1649 = vmatpush1.msra.mxu0 0.0
        %1650 = vmatprep.mubr.f32.mxu0 0.0
        %1651 = vmatmul.mubr.f32.gmra.mrb[0].mxu0 %v1141
        %v1652 = vpop.f32.mrb[0].mxu0
        %v1653 = vadd.f32 0.0, %v1652
        %v1654 = vpop.f32.mrb[0].mxu0
        %1655 = vmatprep.mubr.f32.mxu0 0.0
        %1656 = vmatmul.mubr.f32.gmra.mrb[0].mxu0 %v1142
        %v1657 = vpop.f32.mrb[0].mxu0
        %v1658 = vadd.f32 0.0, %v1657
        %v1659 = vpop.f32.mrb[0].mxu0
        %1660 = vmatprep.mubr.f32.mxu0 0.0
        %1661 = vmatmul.mubr.f32.gmra.mrb[0].mxu0 %v1143
        %v1662 = vpop.f32.mrb[0].mxu0
        %v1663 = vadd.f32 0.0, %v1662
        %v1664 = vpop.f32.mrb[0].mxu0
        %1665 = vmatprep.mubr.f32.mxu0 0.0
        %1666 = vmatmul.mubr.f32.gmra.mrb[0].mxu0 %v1144
        %v1667 = vpop.f32.mrb[0].mxu0
        %v1668 = vadd.f32 0.0, %v1667
        %v1669 = vpop.f32.mrb[0].mxu0
        %1670 = vdwg.mxu0
        %1671 = vst.msk [vmem:[#allocation4 + $0x80] sm:$0xff] %vm1246, %v1653
        %1672 = vst.msk [vmem:[#allocation4 + $0x88] sm:$0xff] %vm1246, %v1658
        %1673 = vst.msk [vmem:[#allocation4 + $0x90] sm:$0xff] %vm1246, %v1663
        %1674 = vst.msk [vmem:[#allocation4 + $0x98] sm:$0xff] %vm1246, %v1668
        %s1675 = scalar_lea.vmem %s9, 640
        %v1676 = vld [vmem:[%s1675] sm:$0xff]
        %v1677 = vld [vmem:[%s1675 + $0x8] sm:$0xff]
        %v1678 = vld [vmem:[%s1675 + $0x10] sm:$0xff]
        %v1679 = vld [vmem:[%s1675 + $0x18] sm:$0xff]
        %v1680 = vld [vmem:[%s1675 + $0x20] sm:$0xff]
        %v1681 = vld [vmem:[%s1675 + $0x28] sm:$0xff]
        %v1682 = vld [vmem:[%s1675 + $0x30] sm:$0xff]
        %v1683 = vld [vmem:[%s1675 + $0x38] sm:$0xff]
        %v1684 = vld [vmem:[%s1675 + $0x40] sm:$0xff]
        %v1685 = vld [vmem:[%s1675 + $0x48] sm:$0xff]
        %v1686 = vld [vmem:[%s1675 + $0x50] sm:$0xff]
        %v1687 = vld [vmem:[%s1675 + $0x58] sm:$0xff]
        %v1688 = vld [vmem:[%s1675 + $0x60] sm:$0xff]
        %v1689 = vld [vmem:[%s1675 + $0x68] sm:$0xff]
        %v1690 = vld [vmem:[%s1675 + $0x70] sm:$0xff]
        %v1691 = vld [vmem:[%s1675 + $0x78] sm:$0xff]
        %1692 = vmatprep.subr.mxu0 0.0
        %1693 = vmatpush1.msra.mxu0 %v1676
        %1694 = vmatprep.subr.mxu0 0.0
        %1695 = vmatpush1.msra.mxu0 %v1677
        %1696 = vmatprep.subr.mxu0 0.0
        %1697 = vmatpush1.msra.mxu0 %v1678
        %1698 = vmatprep.subr.mxu0 0.0
        %1699 = vmatpush1.msra.mxu0 %v1679
        %1700 = vmatprep.subr.mxu0 0.0
        %1701 = vmatpush1.msra.mxu0 %v1680
        %1702 = vmatprep.subr.mxu0 0.0
        %1703 = vmatpush1.msra.mxu0 %v1681
        %1704 = vmatprep.subr.mxu0 0.0
        %1705 = vmatpush1.msra.mxu0 %v1682
        %1706 = vmatprep.subr.mxu0 0.0
        %1707 = vmatpush1.msra.mxu0 %v1683
        %1708 = vmatprep.subr.mxu0 0.0
        %1709 = vmatpush1.msra.mxu0 %v1684
        %1710 = vmatprep.subr.mxu0 0.0
        %1711 = vmatpush1.msra.mxu0 %v1685
        %1712 = vmatprep.subr.mxu0 0.0
        %1713 = vmatpush1.msra.mxu0 %v1686
        %1714 = vmatprep.subr.mxu0 0.0
        %1715 = vmatpush1.msra.mxu0 %v1687
        %1716 = vmatprep.subr.mxu0 0.0
        %1717 = vmatpush1.msra.mxu0 %v1688
        %1718 = vmatprep.subr.mxu0 0.0
        %1719 = vmatpush1.msra.mxu0 %v1689
        %1720 = vmatprep.subr.mxu0 0.0
        %1721 = vmatpush1.msra.mxu0 %v1690
        %1722 = vmatprep.subr.mxu0 0.0
        %1723 = vmatpush1.msra.mxu0 %v1691
        %1724 = vmatprep.subr.mxu0 0.0
        %1725 = vmatpush1.msra.mxu0 0.0
        %1726 = vmatprep.subr.mxu0 0.0
        %1727 = vmatpush1.msra.mxu0 0.0
        %1728 = vmatprep.subr.mxu0 0.0
        %1729 = vmatpush1.msra.mxu0 0.0
        %1730 = vmatprep.subr.mxu0 0.0
        %1731 = vmatpush1.msra.mxu0 0.0
        %1732 = vmatprep.subr.mxu0 0.0
        %1733 = vmatpush1.msra.mxu0 0.0
        %1734 = vmatprep.subr.mxu0 0.0
        %1735 = vmatpush1.msra.mxu0 0.0
        %1736 = vmatprep.subr.mxu0 0.0
        %1737 = vmatpush1.msra.mxu0 0.0
        %1738 = vmatprep.subr.mxu0 0.0
        %1739 = vmatpush1.msra.mxu0 0.0
        %1740 = vmatprep.subr.mxu0 0.0
        %1741 = vmatpush1.msra.mxu0 0.0
        %1742 = vmatprep.subr.mxu0 0.0
        %1743 = vmatpush1.msra.mxu0 0.0
        %1744 = vmatprep.subr.mxu0 0.0
        %1745 = vmatpush1.msra.mxu0 0.0
        %1746 = vmatprep.subr.mxu0 0.0
        %1747 = vmatpush1.msra.mxu0 0.0
        %1748 = vmatprep.subr.mxu0 0.0
        %1749 = vmatpush1.msra.mxu0 0.0
        %1750 = vmatprep.subr.mxu0 0.0
        %1751 = vmatpush1.msra.mxu0 0.0
        %1752 = vmatprep.subr.mxu0 0.0
        %1753 = vmatpush1.msra.mxu0 0.0
        %1754 = vmatprep.subr.mxu0 0.0
        %1755 = vmatpush1.msra.mxu0 0.0
        %1756 = vmatprep.mubr.f32.mxu0 0.0
        %1757 = vmatmul.mubr.f32.gmra.mrb[0].mxu0 %v1141
        %v1758 = vpop.f32.mrb[0].mxu0
        %v1759 = vadd.f32 0.0, %v1758
        %v1760 = vpop.f32.mrb[0].mxu0
        %1761 = vmatprep.mubr.f32.mxu0 0.0
        %1762 = vmatmul.mubr.f32.gmra.mrb[0].mxu0 %v1142
        %v1763 = vpop.f32.mrb[0].mxu0
        %v1764 = vadd.f32 0.0, %v1763
        %v1765 = vpop.f32.mrb[0].mxu0
        %1766 = vmatprep.mubr.f32.mxu0 0.0
        %1767 = vmatmul.mubr.f32.gmra.mrb[0].mxu0 %v1143
        %v1768 = vpop.f32.mrb[0].mxu0
        %v1769 = vadd.f32 0.0, %v1768
        %v1770 = vpop.f32.mrb[0].mxu0
        %1771 = vmatprep.mubr.f32.mxu0 0.0
        %1772 = vmatmul.mubr.f32.gmra.mrb[0].mxu0 %v1144
        %v1773 = vpop.f32.mrb[0].mxu0
        %v1774 = vadd.f32 0.0, %v1773
        %v1775 = vpop.f32.mrb[0].mxu0
        %1776 = vdwg.mxu0
        %1777 = vst.msk [vmem:[#allocation4 + $0xa0] sm:$0xff] %vm1246, %v1759
        %1778 = vst.msk [vmem:[#allocation4 + $0xa8] sm:$0xff] %vm1246, %v1764
        %1779 = vst.msk [vmem:[#allocation4 + $0xb0] sm:$0xff] %vm1246, %v1769
        %1780 = vst.msk [vmem:[#allocation4 + $0xb8] sm:$0xff] %vm1246, %v1774
        %s1781 = scalar_lea.vmem %s9, 768
        %v1782 = vld [vmem:[%s1781] sm:$0xff]
        %v1783 = vld [vmem:[%s1781 + $0x8] sm:$0xff]
        %v1784 = vld [vmem:[%s1781 + $0x10] sm:$0xff]
        %v1785 = vld [vmem:[%s1781 + $0x18] sm:$0xff]
        %v1786 = vld [vmem:[%s1781 + $0x20] sm:$0xff]
        %v1787 = vld [vmem:[%s1781 + $0x28] sm:$0xff]
        %v1788 = vld [vmem:[%s1781 + $0x30] sm:$0xff]
        %v1789 = vld [vmem:[%s1781 + $0x38] sm:$0xff]
        %v1790 = vld [vmem:[%s1781 + $0x40] sm:$0xff]
        %v1791 = vld [vmem:[%s1781 + $0x48] sm:$0xff]
        %v1792 = vld [vmem:[%s1781 + $0x50] sm:$0xff]
        %v1793 = vld [vmem:[%s1781 + $0x58] sm:$0xff]
        %v1794 = vld [vmem:[%s1781 + $0x60] sm:$0xff]
        %v1795 = vld [vmem:[%s1781 + $0x68] sm:$0xff]
        %v1796 = vld [vmem:[%s1781 + $0x70] sm:$0xff]
        %v1797 = vld [vmem:[%s1781 + $0x78] sm:$0xff]
        %1798 = vmatprep.subr.mxu0 0.0
        %1799 = vmatpush1.msra.mxu0 %v1782
        %1800 = vmatprep.subr.mxu0 0.0
        %1801 = vmatpush1.msra.mxu0 %v1783
        %1802 = vmatprep.subr.mxu0 0.0
        %1803 = vmatpush1.msra.mxu0 %v1784
        %1804 = vmatprep.subr.mxu0 0.0
        %1805 = vmatpush1.msra.mxu0 %v1785
        %1806 = vmatprep.subr.mxu0 0.0
        %1807 = vmatpush1.msra.mxu0 %v1786
        %1808 = vmatprep.subr.mxu0 0.0
        %1809 = vmatpush1.msra.mxu0 %v1787
        %1810 = vmatprep.subr.mxu0 0.0
        %1811 = vmatpush1.msra.mxu0 %v1788
        %1812 = vmatprep.subr.mxu0 0.0
        %1813 = vmatpush1.msra.mxu0 %v1789
        %1814 = vmatprep.subr.mxu0 0.0
        %1815 = vmatpush1.msra.mxu0 %v1790
        %1816 = vmatprep.subr.mxu0 0.0
        %1817 = vmatpush1.msra.mxu0 %v1791
        %1818 = vmatprep.subr.mxu0 0.0
        %1819 = vmatpush1.msra.mxu0 %v1792
        %1820 = vmatprep.subr.mxu0 0.0
        %1821 = vmatpush1.msra.mxu0 %v1793
        %1822 = vmatprep.subr.mxu0 0.0
        %1823 = vmatpush1.msra.mxu0 %v1794
        %1824 = vmatprep.subr.mxu0 0.0
        %1825 = vmatpush1.msra.mxu0 %v1795
        %1826 = vmatprep.subr.mxu0 0.0
        %1827 = vmatpush1.msra.mxu0 %v1796
        %1828 = vmatprep.subr.mxu0 0.0
        %1829 = vmatpush1.msra.mxu0 %v1797
        %1830 = vmatprep.subr.mxu0 0.0
        %1831 = vmatpush1.msra.mxu0 0.0
        %1832 = vmatprep.subr.mxu0 0.0
        %1833 = vmatpush1.msra.mxu0 0.0
        %1834 = vmatprep.subr.mxu0 0.0
        %1835 = vmatpush1.msra.mxu0 0.0
        %1836 = vmatprep.subr.mxu0 0.0
        %1837 = vmatpush1.msra.mxu0 0.0
        %1838 = vmatprep.subr.mxu0 0.0
        %1839 = vmatpush1.msra.mxu0 0.0
        %1840 = vmatprep.subr.mxu0 0.0
        %1841 = vmatpush1.msra.mxu0 0.0
        %1842 = vmatprep.subr.mxu0 0.0
        %1843 = vmatpush1.msra.mxu0 0.0
        %1844 = vmatprep.subr.mxu0 0.0
        %1845 = vmatpush1.msra.mxu0 0.0
        %1846 = vmatprep.subr.mxu0 0.0
        %1847 = vmatpush1.msra.mxu0 0.0
        %1848 = vmatprep.subr.mxu0 0.0
        %1849 = vmatpush1.msra.mxu0 0.0
        %1850 = vmatprep.subr.mxu0 0.0
        %1851 = vmatpush1.msra.mxu0 0.0
        %1852 = vmatprep.subr.mxu0 0.0
        %1853 = vmatpush1.msra.mxu0 0.0
        %1854 = vmatprep.subr.mxu0 0.0
        %1855 = vmatpush1.msra.mxu0 0.0
        %1856 = vmatprep.subr.mxu0 0.0
        %1857 = vmatpush1.msra.mxu0 0.0
        %1858 = vmatprep.subr.mxu0 0.0
        %1859 = vmatpush1.msra.mxu0 0.0
        %1860 = vmatprep.subr.mxu0 0.0
        %1861 = vmatpush1.msra.mxu0 0.0
        %1862 = vmatprep.mubr.f32.mxu0 0.0
        %1863 = vmatmul.mubr.f32.gmra.mrb[0].mxu0 %v1141
        %v1864 = vpop.f32.mrb[0].mxu0
        %v1865 = vadd.f32 0.0, %v1864
        %v1866 = vpop.f32.mrb[0].mxu0
        %1867 = vmatprep.mubr.f32.mxu0 0.0
        %1868 = vmatmul.mubr.f32.gmra.mrb[0].mxu0 %v1142
        %v1869 = vpop.f32.mrb[0].mxu0
        %v1870 = vadd.f32 0.0, %v1869
        %v1871 = vpop.f32.mrb[0].mxu0
        %1872 = vmatprep.mubr.f32.mxu0 0.0
        %1873 = vmatmul.mubr.f32.gmra.mrb[0].mxu0 %v1143
        %v1874 = vpop.f32.mrb[0].mxu0
        %v1875 = vadd.f32 0.0, %v1874
        %v1876 = vpop.f32.mrb[0].mxu0
        %1877 = vmatprep.mubr.f32.mxu0 0.0
        %1878 = vmatmul.mubr.f32.gmra.mrb[0].mxu0 %v1144
        %v1879 = vpop.f32.mrb[0].mxu0
        %v1880 = vadd.f32 0.0, %v1879
        %v1881 = vpop.f32.mrb[0].mxu0
        %1882 = vdwg.mxu0
        %1883 = vst.msk [vmem:[#allocation4 + $0xc0] sm:$0xff] %vm1246, %v1865
        %1884 = vst.msk [vmem:[#allocation4 + $0xc8] sm:$0xff] %vm1246, %v1870
        %1885 = vst.msk [vmem:[#allocation4 + $0xd0] sm:$0xff] %vm1246, %v1875
        %1886 = vst.msk [vmem:[#allocation4 + $0xd8] sm:$0xff] %vm1246, %v1880
        %v1887 = vld [vmem:[%s10] sm:$0xff]
        %v1888 = vld [vmem:[%s10 + $0x8] sm:$0xff]
        %v1889 = vld [vmem:[%s10 + $0x10] sm:$0xff]
        %v1890 = vld [vmem:[%s10 + $0x18] sm:$0xff]
        %v1891 = vld [vmem:[%s10 + $0x20] sm:$0xff]
        %v1892 = vld [vmem:[%s10 + $0x28] sm:$0xff]
        %v1893 = vld [vmem:[%s10 + $0x30] sm:$0xff]
        %v1894 = vld [vmem:[%s10 + $0x38] sm:$0xff]
        %v1895 = vld [vmem:[#allocation4] sm:$0xff]
        %v1896 = vld [vmem:[#allocation4 + $0x8] sm:$0xff]
        %v1897 = vld [vmem:[#allocation4 + $0x10] sm:$0xff]
        %v1898 = vld [vmem:[#allocation4 + $0x18] sm:$0xff]
        %v1899 = vld [vmem:[#allocation4 + $0x20] sm:$0xff]
        %v1900 = vld [vmem:[#allocation4 + $0x28] sm:$0xff]
        %v1901 = vld [vmem:[#allocation4 + $0x30] sm:$0xff]
        %v1902 = vld [vmem:[#allocation4 + $0x38] sm:$0xff]
        %v1903 = vld [vmem:[#allocation4 + $0x40] sm:$0xff]
        %v1904 = vld [vmem:[#allocation4 + $0x48] sm:$0xff]
        %v1905 = vld [vmem:[#allocation4 + $0x50] sm:$0xff]
        %v1906 = vld [vmem:[#allocation4 + $0x58] sm:$0xff]
        %v1907 = vld [vmem:[#allocation4 + $0x60] sm:$0xff]
        %v1908 = vld [vmem:[#allocation4 + $0x68] sm:$0xff]
        %v1909 = vld [vmem:[#allocation4 + $0x70] sm:$0xff]
        %v1910 = vld [vmem:[#allocation4 + $0x78] sm:$0xff]
        %v1911 = vld [vmem:[#allocation4 + $0x80] sm:$0xff]
        %v1912 = vld [vmem:[#allocation4 + $0x88] sm:$0xff]
        %v1913 = vld [vmem:[#allocation4 + $0x90] sm:$0xff]
        %v1914 = vld [vmem:[#allocation4 + $0x98] sm:$0xff]
        %v1915 = vld [vmem:[#allocation4 + $0xa0] sm:$0xff]
        %v1916 = vld [vmem:[#allocation4 + $0xa8] sm:$0xff]
        %v1917 = vld [vmem:[#allocation4 + $0xb0] sm:$0xff]
        %v1918 = vld [vmem:[#allocation4 + $0xb8] sm:$0xff]
        %v1919 = vld [vmem:[#allocation4 + $0xc0] sm:$0xff]
        %v1920 = vld [vmem:[#allocation4 + $0xc8] sm:$0xff]
        %v1921 = vld [vmem:[#allocation4 + $0xd0] sm:$0xff]
        %v1922 = vld [vmem:[#allocation4 + $0xd8] sm:$0xff]
        %v1924 = vsel %vm1246, %v1888, 0
        %v1927 = vsel %vm1246, %v1890, 0
        %v1930 = vsel %vm1246, %v1892, 0
        %v1933 = vsel %vm1246, %v1894, 0
        %1935 = vmatprep.subr.mxu0 0.0
        %1936 = vmatpush1.msra.mxu0 %v1895
        %1937 = vmatprep.subr.mxu0 0.0
        %1938 = vmatpush1.msra.mxu0 %v1896
        %1939 = vmatprep.subr.mxu0 0.0
        %1940 = vmatpush1.msra.mxu0 %v1897
        %1941 = vmatprep.subr.mxu0 0.0
        %1942 = vmatpush1.msra.mxu0 %v1898
        %1943 = vmatprep.subr.mxu0 0.0
        %1944 = vmatpush1.msra.mxu0 %v1899
        %1945 = vmatprep.subr.mxu0 0.0
        %1946 = vmatpush1.msra.mxu0 %v1900
        %1947 = vmatprep.subr.mxu0 0.0
        %1948 = vmatpush1.msra.mxu0 %v1901
        %1949 = vmatprep.subr.mxu0 0.0
        %1950 = vmatpush1.msra.mxu0 %v1902
        %1951 = vmatprep.subr.mxu0 0.0
        %1952 = vmatpush1.msra.mxu0 %v1903
        %1953 = vmatprep.subr.mxu0 0.0
        %1954 = vmatpush1.msra.mxu0 %v1904
        %1955 = vmatprep.subr.mxu0 0.0
        %1956 = vmatpush1.msra.mxu0 %v1905
        %1957 = vmatprep.subr.mxu0 0.0
        %1958 = vmatpush1.msra.mxu0 %v1906
        %1959 = vmatprep.subr.mxu0 0.0
        %1960 = vmatpush1.msra.mxu0 %v1907
        %1961 = vmatprep.subr.mxu0 0.0
        %1962 = vmatpush1.msra.mxu0 %v1908
        %1963 = vmatprep.subr.mxu0 0.0
        %1964 = vmatpush1.msra.mxu0 %v1909
        %1965 = vmatprep.subr.mxu0 0.0
        %1966 = vmatpush1.msra.mxu0 %v1910
        %1967 = vmatprep.subr.mxu0 0.0
        %1968 = vmatpush1.msra.mxu0 %v1911
        %1969 = vmatprep.subr.mxu0 0.0
        %1970 = vmatpush1.msra.mxu0 %v1912
        %1971 = vmatprep.subr.mxu0 0.0
        %1972 = vmatpush1.msra.mxu0 %v1913
        %1973 = vmatprep.subr.mxu0 0.0
        %1974 = vmatpush1.msra.mxu0 %v1914
        %1975 = vmatprep.subr.mxu0 0.0
        %1976 = vmatpush1.msra.mxu0 %v1915
        %1977 = vmatprep.subr.mxu0 0.0
        %1978 = vmatpush1.msra.mxu0 %v1916
        %1979 = vmatprep.subr.mxu0 0.0
        %1980 = vmatpush1.msra.mxu0 %v1917
        %1981 = vmatprep.subr.mxu0 0.0
        %1982 = vmatpush1.msra.mxu0 %v1918
        %1983 = vmatprep.subr.mxu0 0.0
        %1984 = vmatpush1.msra.mxu0 %v1919
        %1985 = vmatprep.subr.mxu0 0.0
        %1986 = vmatpush1.msra.mxu0 %v1920
        %1987 = vmatprep.subr.mxu0 0.0
        %1988 = vmatpush1.msra.mxu0 %v1921
        %1989 = vmatprep.subr.mxu0 0.0
        %1990 = vmatpush1.msra.mxu0 %v1922
        %1991 = vmatprep.subr.mxu0 0.0
        %1992 = vmatpush1.msra.mxu0 0.0
        %1993 = vmatprep.subr.mxu0 0.0
        %1994 = vmatpush1.msra.mxu0 0.0
        %1995 = vmatprep.subr.mxu0 0.0
        %1996 = vmatpush1.msra.mxu0 0.0
        %1997 = vmatprep.subr.mxu0 0.0
        %1998 = vmatpush1.msra.mxu0 0.0
        %1999 = vmatprep.mubr.f32.mxu0 %v1924
        %2000 = vmatmul.mubr.f32.gmra.mrb[0].mxu0 %v1887
        %v2001 = vpop.f32.mrb[0].mxu0
        %v2002 = vadd.f32 0.0, %v2001
        %v2003 = vpop.f32.mrb[0].mxu0
        %2004 = vmatprep.mubr.f32.mxu0 %v1927
        %2005 = vmatmul.mubr.f32.gmra.mrb[0].mxu0 %v1889
        %v2006 = vpop.f32.mrb[0].mxu0
        %v2007 = vadd.f32 0.0, %v2006
        %v2008 = vpop.f32.mrb[0].mxu0
        %2009 = vmatprep.mubr.f32.mxu0 %v1930
        %2010 = vmatmul.mubr.f32.gmra.mrb[0].mxu0 %v1891
        %v2011 = vpop.f32.mrb[0].mxu0
        %v2012 = vadd.f32 0.0, %v2011
        %v2013 = vpop.f32.mrb[0].mxu0
        %2014 = vmatprep.mubr.f32.mxu0 %v1933
        %2015 = vmatmul.mubr.f32.gmra.mrb[0].mxu0 %v1893
        %v2016 = vpop.f32.mrb[0].mxu0
        %v2017 = vadd.f32 0.0, %v2016
        %v2018 = vpop.f32.mrb[0].mxu0
        %2019 = vdwg.mxu0
        %v2020 = vtanh.pop %v2002
        %v2021 = vtanh.pop %v2007
        %v2022 = vtanh.pop %v2012
        %v2023 = vtanh.pop %v2017
        %2024 = vst.msk [vmem:[%s379] sm:$0xff] %vm714, %v2020
        %2025 = vst.msk [vmem:[%s379 + $0x8] sm:$0xff] %vm714, %v2021
        %2026 = vst.msk [vmem:[%s379 + $0x10] sm:$0xff] %vm714, %v2022
        %2027 = vst.msk [vmem:[%s379 + $0x18] sm:$0xff] %vm714, %v2023
        %2032 = vrot.lane.b32.xlu0 %v2020, 96
        %v2033 = vpop.permute.xlu0 %2032
        %2034 = vrot.lane.b32.xlu0 %v2021, 96
        %v2035 = vpop.permute.xlu0 %2034
        %2036 = vrot.lane.b32.xlu0 %v2022, 96
        %v2037 = vpop.permute.xlu0 %2036
        %2038 = vrot.lane.b32.xlu0 %v2023, 96
        %v2039 = vpop.permute.xlu0 %2038
        %s2044 = scalar_lea.vmem %s379, 32 [#allocation5]
        %2045 = vst.msk [vmem:[%s2044] sm:$0xff] %vm714, %v2033
        %2046 = vst.msk [vmem:[%s2044 + $0x8] sm:$0xff] %vm714, %v2035
        %2047 = vst.msk [vmem:[%s2044 + $0x10] sm:$0xff] %vm714, %v2037
        %2048 = vst.msk [vmem:[%s2044 + $0x18] sm:$0xff] %vm714, %v2039
        %2049 = vrot.lane.b32.xlu0 %v2020, 64
        %v2050 = vpop.permute.xlu0 %2049
        %2051 = vrot.lane.b32.xlu0 %v2021, 64
        %v2052 = vpop.permute.xlu0 %2051
        %2053 = vrot.lane.b32.xlu0 %v2022, 64
        %v2054 = vpop.permute.xlu0 %2053
        %2055 = vrot.lane.b32.xlu0 %v2023, 64
        %v2056 = vpop.permute.xlu0 %2055
        %s2061 = scalar_lea.vmem %s379, 64 [#allocation5]
        %2062 = vst.msk [vmem:[%s2061] sm:$0xff] %vm714, %v2050
        %2063 = vst.msk [vmem:[%s2061 + $0x8] sm:$0xff] %vm714, %v2052
        %2064 = vst.msk [vmem:[%s2061 + $0x10] sm:$0xff] %vm714, %v2054
        %2065 = vst.msk [vmem:[%s2061 + $0x18] sm:$0xff] %vm714, %v2056
        %s2066 = sand.u32 %s269, 1
        %s2067 = scalar_lea.sflag [#allocation6], %s2066
        %s2068 = sand.u32 %s269, 1
        %s2069 = smul.addr %s2068, 96
        %s2070 = scalar_lea.vmem [#allocation5], %s2069
        // Predicated region
        $region65: #{tpu_custom_call.1} parent=63 // pred_check
          %p2071 = pneg %p279
        $region66: #{tpu_custom_call.1} parent=63 // pred_check_branch
          %2073 = sbr.rel (%p2071) target = $region68
        $region67: #{tpu_custom_call.1} parent=63 // pred_region
          %s2075 = ssub.s32 1536, 1536
          %2076 = vsyncadd %s2067, %s2075
          %s2077 = smul.addr %s25, 12
          %s2078 = smul.addr %s2077, 128
          %s2079 = scalar_lea.hbm %s11, %s2078
          %s2080 = sshll.u32 %s2070, 4
          %s2081 = int_to_ptr.vmem [resolvable:$true] %s2080
          %2086 = dma.vmem_to_hbm [thread:$0]  %s2081, 1536, %s2079, %s2067, 128, 128, 8
        $region68: #{tpu_custom_call.1} parent=63 // pred_fallthru
          _
      $region64: #{tpu_custom_call.1} parent=5 // pred_fallthru
        _
      %p2087 = scmp.le.s32.totalorder 2, %s20
      // Predicated region
      $region69: #{tpu_custom_call.1} parent=5 // pred_check
        %p2088 = pneg %p2087
      $region70: #{tpu_custom_call.1} parent=5 // pred_check_branch
        %2090 = sbr.rel (%p2088) target = $region72
      $region71: #{tpu_custom_call.1} parent=5 // pred_region
        %s2091 = ssub.s32 %s20, 2
        // Predicated region
        $region73: #{tpu_custom_call.1} parent=71 // pred_check
          %p2092 = pneg %p285
        $region74: #{tpu_custom_call.1} parent=71 // pred_check_branch
          %2094 = sbr.rel (%p2092) target = $region76
        $region75: #{tpu_custom_call.1} parent=71 // pred_region
          %s2095 = sand.u32 %s270, 1
          %s2096 = scalar_lea.sflag [#allocation6], %s2095
          %s2097 = sand.u32 %s270, 1
          %s2098 = smul.addr %s2097, 96
          %s2099 = scalar_lea.vmem [#allocation5], %s2098
          %2100 = dma.done %s2096, 1536
        $region76: #{tpu_custom_call.1} parent=71 // pred_fallthru
          _
      $region72: #{tpu_custom_call.1} parent=5 // pred_fallthru
        _
    $region6: #{tpu_custom_call.1} parent=1 // loop_footer
      %s24 = sadd.s32 1, %s20
    $region7: #{tpu_custom_call.1} parent=1 // loop_footer_branch
      %19 = sbr.rel target = $region3
    $region8: #{tpu_custom_call.1} parent=1 // loop_exit
      _
    %2101 = vsyncpa [#allocation6], 1
    %s2102 = scalar_lea.sflag [#allocation6], 1
    %2103 = vsyncpa %s2102, 1

</llo_original>
